<compile_context>
chip_gen: v7x
topology: tpu7x:2x2x1
jax: 0.10.0
libtpu: 0.0.40
codegen_flags: <defaults>
</compile_context>

<pallas_src>
import functools

import jax
import jax.numpy as jnp
from jax.experimental import pallas as pl
from jax.experimental.pallas import tpu as pltpu

# MLP dimensions from the PyTorch module.
DIMS = [28 * 28, 128, 256, 512, 128, 10]

K_PAD = 896    # 784 -> 7 * 128: dense K tiles on the dominant first-layer matmul
N_PAD = 128    # 10  -> 128:     lane-dense output stores (no vst.msk)
DEFAULT_TB = 256  # batch tile (multiple of 256 fills v6e/v7x MXU rows)


def mlp_kernel(x_ref,
               w1_ref, b1_ref,
               w2_ref, b2_ref,
               w3_ref, b3_ref,
               w4_ref, b4_ref,
               w5_ref, b5_ref,
               o_ref):
    """Fused forward pass: 5 matmuls (bf16 in, f32 accum) + ReLUs on one tile."""
    h = jnp.dot(x_ref[...], w1_ref[...],
                preferred_element_type=jnp.float32) + b1_ref[...]
    h = jnp.maximum(h, 0.0)

    h = jnp.dot(h.astype(jnp.bfloat16), w2_ref[...],
                preferred_element_type=jnp.float32) + b2_ref[...]
    h = jnp.maximum(h, 0.0)

    h = jnp.dot(h.astype(jnp.bfloat16), w3_ref[...],
                preferred_element_type=jnp.float32) + b3_ref[...]
    h = jnp.maximum(h, 0.0)

    h = jnp.dot(h.astype(jnp.bfloat16), w4_ref[...],
                preferred_element_type=jnp.float32) + b4_ref[...]
    h = jnp.maximum(h, 0.0)

    # Final layer: no ReLU. Output is lane-dense (N = 128, zero-padded cols).
    o_ref[...] = (jnp.dot(h.astype(jnp.bfloat16), w5_ref[...],
                          preferred_element_type=jnp.float32)
                  + b5_ref[...]).astype(o_ref.dtype)


def _const_spec(shape):
    """Full-array block, same block regardless of grid index (stays resident)."""
    return pl.BlockSpec(shape, lambda i: tuple(0 for _ in shape))


def prepare_params(params_f32):
    """Cast weights to bf16 and zero-pad the ragged dims (w1 K, w5/b5 N)."""
    prepped = []
    for li, (w, b) in enumerate(params_f32):
        w = w.astype(jnp.bfloat16)
        b = b.astype(jnp.float32)
        if li == 0:  # pad contraction dim 784 -> 896
            w = jnp.pad(w, ((0, K_PAD - w.shape[0]), (0, 0)))
        if li == len(params_f32) - 1:  # pad output dim 10 -> 128
            w = jnp.pad(w, ((0, 0), (0, N_PAD - w.shape[1])))
            b = jnp.pad(b, ((0, 0), (0, N_PAD - b.shape[1])))
        prepped.append((w, b))
    return prepped


@functools.partial(jax.jit, static_argnames=("tb",))
def mnist_fcn_forward(x, prepped_params, tb=DEFAULT_TB):
    """x: (B, 784) float32.  prepped_params: output of prepare_params()."""
    B = x.shape[0]

    # Pad + cast the input: K 784 -> 896 (zeros), f32 -> bf16.
    x = jnp.pad(x, ((0, 0), (0, K_PAD - x.shape[1]))).astype(jnp.bfloat16)

    # Choose a batch tile: small batches use one (sublane-aligned) tile,
    # large batches use tb-sized tiles (default 256, pipelined & parallel).
    b_aligned = max(8, ((B + 7) // 8) * 8)
    TB = min(tb, b_aligned)
    B_pad = ((b_aligned + TB - 1) // TB) * TB
    if B_pad != B:
        x = jnp.pad(x, ((0, B_pad - B), (0, 0)))

    num_tiles = B_pad // TB

    flat_params = []
    in_specs = [pl.BlockSpec((TB, K_PAD), lambda i: (i, 0))]
    for w, b in prepped_params:
        flat_params += [w, b]
        in_specs += [_const_spec(w.shape), _const_spec(b.shape)]

    out = pl.pallas_call(
        mlp_kernel,
        out_shape=jax.ShapeDtypeStruct((B_pad, N_PAD), jnp.float32),
        grid=(num_tiles,),
        in_specs=in_specs,
        out_specs=pl.BlockSpec((TB, N_PAD), lambda i: (i, 0)),
        compiler_params=pltpu.CompilerParams(
            dimension_semantics=("parallel",)),
    )(x, *flat_params)

    # Slice away batch padding and the zero-padded output columns.
    return out[:B, :DIMS[-1]]


def init_params(key):
    """nn.Linear-style init: uniform(-1/sqrt(fan_in), 1/sqrt(fan_in)), f32."""
    params = []
    for i in range(len(DIMS) - 1):
        fan_in, fan_out = DIMS[i], DIMS[i + 1]
        key, kw, kb = jax.random.split(key, 3)
        bound = 1.0 / jnp.sqrt(jnp.float32(fan_in))
        w = jax.random.uniform(kw, (fan_in, fan_out), jnp.float32, -bound, bound)
        b = jax.random.uniform(kb, (1, fan_out), jnp.float32, -bound, bound)
        params.append((w, b))
    return params


def reference_forward_f32(x, params):
    """Pure-f32 JAX reference (matches the PyTorch module exactly)."""
    h = x
    for i, (w, b) in enumerate(params):
        h = h @ w + b
        if i < len(params) - 1:
            h = jnp.maximum(h, 0.0)
    return h


def reference_forward_bf16(x, params):
    """Reference emulating the kernel's bf16-input / f32-accumulate matmuls."""
    h = x.astype(jnp.bfloat16)
    for i, (w, b) in enumerate(params):
        h = jnp.dot(h, w.astype(jnp.bfloat16),
                    preferred_element_type=jnp.float32) + b
        if i < len(params) - 1:
            h = jnp.maximum(h, 0.0)
            h = h.astype(jnp.bfloat16)
    return h


if __name__ == "__main__":
    key = jax.random.PRNGKey(0)
    key, kx = jax.random.split(key)

    B = 8  # small inference batch; kernel also handles large B via batch tiling
    x = jax.random.normal(kx, (B, DIMS[0]), jnp.float32)

    params = init_params(key)
    prepped = prepare_params(params)

    out = mnist_fcn_forward(x, prepped)
    out = jax.block_until_ready(out)
    assert out.shape == (B, DIMS[-1])

    # Tight check vs a reference using the same bf16 quantization.
    ref_bf16 = reference_forward_bf16(x, params)
    assert jnp.allclose(out, ref_bf16, atol=2e-3, rtol=2e-3), \
        "mismatch vs bf16-emulating reference"

    # Loose sanity check vs the exact f32 (PyTorch-equivalent) reference.
    ref_f32 = reference_forward_f32(x, params)
    assert jnp.allclose(out, ref_f32, atol=5e-2, rtol=5e-2), \
        "mismatch vs f32 reference"

    print("KERNEL_OK")
</pallas_src>

<mosaic_0001>
module attributes {stable_mosaic.version = 11 : i64} {
  func.func @mlp_kernel(%arg0: i32, %arg1: memref<8x896xbf16, #tpu.memory_space<vmem>>, %arg2: memref<896x128xbf16, #tpu.memory_space<vmem>>, %arg3: memref<1x128xf32, #tpu.memory_space<vmem>>, %arg4: memref<128x256xbf16, #tpu.memory_space<vmem>>, %arg5: memref<1x256xf32, #tpu.memory_space<vmem>>, %arg6: memref<256x512xbf16, #tpu.memory_space<vmem>>, %arg7: memref<1x512xf32, #tpu.memory_space<vmem>>, %arg8: memref<512x128xbf16, #tpu.memory_space<vmem>>, %arg9: memref<1x128xf32, #tpu.memory_space<vmem>>, %arg10: memref<128x128xbf16, #tpu.memory_space<vmem>>, %arg11: memref<1x128xf32, #tpu.memory_space<vmem>>, %arg12: memref<8x128xf32, #tpu.memory_space<vmem>>) attributes {dimension_semantics = [#tpu.dimension_semantics<parallel>], iteration_bounds = array<i64: 1>, scalar_prefetch = 0 : i64, scratch_operands = 0 : i64, tpu.core_type = #tpu.core_type<tc>, window_params = [{transform_indices = @transform_0, window_bounds = array<i64: 8, 896>}, {pipeline_mode = #tpu.pipeline_mode<synchronous>, transform_indices = @transform_1, window_bounds = array<i64: 896, 128>}, {pipeline_mode = #tpu.pipeline_mode<synchronous>, transform_indices = @transform_2, window_bounds = array<i64: 1, 128>}, {pipeline_mode = #tpu.pipeline_mode<synchronous>, transform_indices = @transform_3, window_bounds = array<i64: 128, 256>}, {pipeline_mode = #tpu.pipeline_mode<synchronous>, transform_indices = @transform_4, window_bounds = array<i64: 1, 256>}, {pipeline_mode = #tpu.pipeline_mode<synchronous>, transform_indices = @transform_5, window_bounds = array<i64: 256, 512>}, {pipeline_mode = #tpu.pipeline_mode<synchronous>, transform_indices = @transform_6, window_bounds = array<i64: 1, 512>}, {pipeline_mode = #tpu.pipeline_mode<synchronous>, transform_indices = @transform_7, window_bounds = array<i64: 512, 128>}, {pipeline_mode = #tpu.pipeline_mode<synchronous>, transform_indices = @transform_8, window_bounds = array<i64: 1, 128>}, {pipeline_mode = #tpu.pipeline_mode<synchronous>, transform_indices = @transform_9, window_bounds = array<i64: 128, 128>}, {pipeline_mode = #tpu.pipeline_mode<synchronous>, transform_indices = @transform_10, window_bounds = array<i64: 1, 128>}, {transform_indices = @transform_11, window_bounds = array<i64: 8, 128>}]} {
    %c0 = arith.constant 0 : index
    %c0_0 = arith.constant 0 : index
    %0 = vector.load %arg1[%c0, %c0_0] : memref<8x896xbf16, #tpu.memory_space<vmem>>, vector<8x896xbf16>
    %c0_1 = arith.constant 0 : index
    %c0_2 = arith.constant 0 : index
    %1 = vector.load %arg2[%c0_1, %c0_2] : memref<896x128xbf16, #tpu.memory_space<vmem>>, vector<896x128xbf16>
    %cst = arith.constant dense<0.000000e+00> : vector<8x128xf32>
    %2 = tpu.matmul %0, %1, %cst {dimension_numbers = #tpu.dot_dimension_numbers<[1], [0], [0], [1], [0, 0, 1, 1], [], []>} : vector<8x896xbf16>, vector<896x128xbf16>, vector<8x128xf32> -> vector<8x128xf32>
    %c0_3 = arith.constant 0 : index
    %c0_4 = arith.constant 0 : index
    %3 = vector.load %arg3[%c0_3, %c0_4] : memref<1x128xf32, #tpu.memory_space<vmem>>, vector<1x128xf32>
    %4 = vector.broadcast %3 : vector<1x128xf32> to vector<8x128xf32>
    %5 = arith.addf %2, %4 : vector<8x128xf32>
    %cst_5 = arith.constant 0.000000e+00 : f32
    %6 = vector.broadcast %cst_5 : f32 to vector<8x128xf32>
    %7 = arith.maximumf %5, %6 : vector<8x128xf32>
    %8 = arith.truncf %7 : vector<8x128xf32> to vector<8x128xbf16>
    %c0_6 = arith.constant 0 : index
    %c0_7 = arith.constant 0 : index
    %9 = vector.load %arg4[%c0_6, %c0_7] : memref<128x256xbf16, #tpu.memory_space<vmem>>, vector<128x256xbf16>
    %cst_8 = arith.constant dense<0.000000e+00> : vector<8x256xf32>
    %10 = tpu.matmul %8, %9, %cst_8 {dimension_numbers = #tpu.dot_dimension_numbers<[1], [0], [0], [1], [0, 0, 1, 1], [], []>} : vector<8x128xbf16>, vector<128x256xbf16>, vector<8x256xf32> -> vector<8x256xf32>
    %c0_9 = arith.constant 0 : index
    %c0_10 = arith.constant 0 : index
    %11 = vector.load %arg5[%c0_9, %c0_10] : memref<1x256xf32, #tpu.memory_space<vmem>>, vector<1x256xf32>
    %12 = vector.broadcast %11 : vector<1x256xf32> to vector<8x256xf32>
    %13 = arith.addf %10, %12 : vector<8x256xf32>
    %cst_11 = arith.constant 0.000000e+00 : f32
    %14 = vector.broadcast %cst_11 : f32 to vector<8x256xf32>
    %15 = arith.maximumf %13, %14 : vector<8x256xf32>
    %16 = arith.truncf %15 : vector<8x256xf32> to vector<8x256xbf16>
    %c0_12 = arith.constant 0 : index
    %c0_13 = arith.constant 0 : index
    %17 = vector.load %arg6[%c0_12, %c0_13] : memref<256x512xbf16, #tpu.memory_space<vmem>>, vector<256x512xbf16>
    %cst_14 = arith.constant dense<0.000000e+00> : vector<8x512xf32>
    %18 = tpu.matmul %16, %17, %cst_14 {dimension_numbers = #tpu.dot_dimension_numbers<[1], [0], [0], [1], [0, 0, 1, 1], [], []>} : vector<8x256xbf16>, vector<256x512xbf16>, vector<8x512xf32> -> vector<8x512xf32>
    %c0_15 = arith.constant 0 : index
    %c0_16 = arith.constant 0 : index
    %19 = vector.load %arg7[%c0_15, %c0_16] : memref<1x512xf32, #tpu.memory_space<vmem>>, vector<1x512xf32>
    %20 = vector.broadcast %19 : vector<1x512xf32> to vector<8x512xf32>
    %21 = arith.addf %18, %20 : vector<8x512xf32>
    %cst_17 = arith.constant 0.000000e+00 : f32
    %22 = vector.broadcast %cst_17 : f32 to vector<8x512xf32>
    %23 = arith.maximumf %21, %22 : vector<8x512xf32>
    %24 = arith.truncf %23 : vector<8x512xf32> to vector<8x512xbf16>
    %c0_18 = arith.constant 0 : index
    %c0_19 = arith.constant 0 : index
    %25 = vector.load %arg8[%c0_18, %c0_19] : memref<512x128xbf16, #tpu.memory_space<vmem>>, vector<512x128xbf16>
    %cst_20 = arith.constant dense<0.000000e+00> : vector<8x128xf32>
    %26 = tpu.matmul %24, %25, %cst_20 {dimension_numbers = #tpu.dot_dimension_numbers<[1], [0], [0], [1], [0, 0, 1, 1], [], []>} : vector<8x512xbf16>, vector<512x128xbf16>, vector<8x128xf32> -> vector<8x128xf32>
    %c0_21 = arith.constant 0 : index
    %c0_22 = arith.constant 0 : index
    %27 = vector.load %arg9[%c0_21, %c0_22] : memref<1x128xf32, #tpu.memory_space<vmem>>, vector<1x128xf32>
    %28 = vector.broadcast %27 : vector<1x128xf32> to vector<8x128xf32>
    %29 = arith.addf %26, %28 : vector<8x128xf32>
    %cst_23 = arith.constant 0.000000e+00 : f32
    %30 = vector.broadcast %cst_23 : f32 to vector<8x128xf32>
    %31 = arith.maximumf %29, %30 : vector<8x128xf32>
    %32 = arith.truncf %31 : vector<8x128xf32> to vector<8x128xbf16>
    %c0_24 = arith.constant 0 : index
    %c0_25 = arith.constant 0 : index
    %33 = vector.load %arg10[%c0_24, %c0_25] : memref<128x128xbf16, #tpu.memory_space<vmem>>, vector<128x128xbf16>
    %cst_26 = arith.constant dense<0.000000e+00> : vector<8x128xf32>
    %34 = tpu.matmul %32, %33, %cst_26 {dimension_numbers = #tpu.dot_dimension_numbers<[1], [0], [0], [1], [0, 0, 1, 1], [], []>} : vector<8x128xbf16>, vector<128x128xbf16>, vector<8x128xf32> -> vector<8x128xf32>
    %c0_27 = arith.constant 0 : index
    %c0_28 = arith.constant 0 : index
    %35 = vector.load %arg11[%c0_27, %c0_28] : memref<1x128xf32, #tpu.memory_space<vmem>>, vector<1x128xf32>
    %36 = vector.broadcast %35 : vector<1x128xf32> to vector<8x128xf32>
    %37 = arith.addf %34, %36 : vector<8x128xf32>
    %c0_29 = arith.constant 0 : index
    %c0_30 = arith.constant 0 : index
    %38 = vector.load %arg12[%c0_29, %c0_30] : memref<8x128xf32, #tpu.memory_space<vmem>>, vector<8x128xf32>
    tpu.vector_store %arg12[%c0_29, %c0_30], %37 {strides = array<i32>} : memref<8x128xf32, #tpu.memory_space<vmem>>, vector<8x128xf32>,
    return
  }
  func.func @transform_0(%arg0: i32) -> (i32, i32) {
    %c0_i32 = arith.constant 0 : i32
    %c0_i32_0 = arith.constant 0 : i32
    return %arg0, %c0_i32 : i32, i32
  }
  func.func @transform_1(%arg0: i32) -> (i32, i32) {
    %c0_i32 = arith.constant 0 : i32
    %c0_i32_0 = arith.constant 0 : i32
    %c0_i32_1 = arith.constant 0 : i32
    return %c0_i32, %c0_i32_0 : i32, i32
  }
  func.func @transform_2(%arg0: i32) -> (i32, i32) {
    %c0_i32 = arith.constant 0 : i32
    %c0_i32_0 = arith.constant 0 : i32
    %c0_i32_1 = arith.constant 0 : i32
    return %c0_i32, %c0_i32_0 : i32, i32
  }
  func.func @transform_3(%arg0: i32) -> (i32, i32) {
    %c0_i32 = arith.constant 0 : i32
    %c0_i32_0 = arith.constant 0 : i32
    %c0_i32_1 = arith.constant 0 : i32
    return %c0_i32, %c0_i32_0 : i32, i32
  }
  func.func @transform_4(%arg0: i32) -> (i32, i32) {
    %c0_i32 = arith.constant 0 : i32
    %c0_i32_0 = arith.constant 0 : i32
    %c0_i32_1 = arith.constant 0 : i32
    return %c0_i32, %c0_i32_0 : i32, i32
  }
  func.func @transform_5(%arg0: i32) -> (i32, i32) {
    %c0_i32 = arith.constant 0 : i32
    %c0_i32_0 = arith.constant 0 : i32
    %c0_i32_1 = arith.constant 0 : i32
    return %c0_i32, %c0_i32_0 : i32, i32
  }
  func.func @transform_6(%arg0: i32) -> (i32, i32) {
    %c0_i32 = arith.constant 0 : i32
    %c0_i32_0 = arith.constant 0 : i32
    %c0_i32_1 = arith.constant 0 : i32
    return %c0_i32, %c0_i32_0 : i32, i32
  }
  func.func @transform_7(%arg0: i32) -> (i32, i32) {
    %c0_i32 = arith.constant 0 : i32
    %c0_i32_0 = arith.constant 0 : i32
    %c0_i32_1 = arith.constant 0 : i32
    return %c0_i32, %c0_i32_0 : i32, i32
  }
  func.func @transform_8(%arg0: i32) -> (i32, i32) {
    %c0_i32 = arith.constant 0 : i32
    %c0_i32_0 = arith.constant 0 : i32
    %c0_i32_1 = arith.constant 0 : i32
    return %c0_i32, %c0_i32_0 : i32, i32
  }
  func.func @transform_9(%arg0: i32) -> (i32, i32) {
    %c0_i32 = arith.constant 0 : i32
    %c0_i32_0 = arith.constant 0 : i32
    %c0_i32_1 = arith.constant 0 : i32
    return %c0_i32, %c0_i32_0 : i32, i32
  }
  func.func @transform_10(%arg0: i32) -> (i32, i32) {
    %c0_i32 = arith.constant 0 : i32
    %c0_i32_0 = arith.constant 0 : i32
    %c0_i32_1 = arith.constant 0 : i32
    return %c0_i32, %c0_i32_0 : i32, i32
  }
  func.func @transform_11(%arg0: i32) -> (i32, i32) {
    %c0_i32 = arith.constant 0 : i32
    %c0_i32_0 = arith.constant 0 : i32
    return %arg0, %c0_i32 : i32, i32
  }
}

</mosaic_0001>

<llo_original>
// kernel: mnist_fcn_forward.1
$region0: #{mnist_fcn_forward.1}
  #allocation0 [shape = 'u32[]', space=smem, size = 0x4, offset = 0x4, fixed_abs, tag = 'smem constant byte address 0x4 - core index']
  #allocation1 [shape = 'u32[144,128]{1,0:T(1,128)}', space=vmem, size = 0x12000, scoped, tag = 'internal scratch']
  %s0 = inlined_call_operand.vmem [shape: bf16[8,896], index: 0, kind: input, shape index: {}]
  %s1 = inlined_call_operand.hbm [shape: bf16[896,128], index: 1, kind: input, shape index: {}]
  %s2 = inlined_call_operand.vmem [shape: f32[1,128], index: 2, kind: input, shape index: {}]
  %s3 = inlined_call_operand.vmem [shape: bf16[128,256], index: 3, kind: input, shape index: {}]
  %s4 = inlined_call_operand.vmem [shape: f32[1,256], index: 4, kind: input, shape index: {}]
  %s5 = inlined_call_operand.hbm [shape: bf16[256,512], index: 5, kind: input, shape index: {}]
  %s6 = inlined_call_operand.vmem [shape: f32[1,512], index: 6, kind: input, shape index: {}]
  %s7 = inlined_call_operand.hbm [shape: bf16[512,128], index: 7, kind: input, shape index: {}]
  %s8 = inlined_call_operand.vmem [shape: f32[1,128], index: 8, kind: input, shape index: {}]
  %s9 = inlined_call_operand.hbm [shape: bf16[128,128], index: 9, kind: input, shape index: {}]
  %s10 = inlined_call_operand.vmem [shape: f32[1,128], index: 10, kind: input, shape index: {}]
  %s11 = inlined_call_operand.hbm [shape: f32[8,128], index: 11, kind: output, shape index: {}]
  %s12 = sld [smem:[#allocation0]]
  $region70: #{mnist_fcn_forward.1} parent=0
    _
  %s14 = ssub.s32 1, %s12
  %s15 = scalar_select 0, %s14, %s12
  $region1: #{mnist_fcn_forward.1} parent=0
    #allocation2 [shape = 'u8[229376]{0}', space=vmem, size = 0x38000, scoped, tag = 'input window, operand 1, single buffered']
    #allocation3 [shape = 's32[1]{0}', space=sflag, size = 0x4, scoped, tag = 'scoped memory for mnist_fcn_forward.1']
    #allocation4 [shape = 's32[1]{0}', space=sflag, size = 0x4, scoped, tag = 'scoped memory for mnist_fcn_forward.1']
    #allocation5 [shape = 'u8[262144]{0}', space=vmem, size = 0x40000, scoped, tag = 'input window, operand 5, single buffered']
    #allocation6 [shape = 's32[1]{0}', space=sflag, size = 0x4, scoped, tag = 'scoped memory for mnist_fcn_forward.1']
    #allocation7 [shape = 'u8[131072]{0}', space=vmem, size = 0x20000, scoped, tag = 'input window, operand 7, single buffered']
    #allocation8 [shape = 'u8[32768]{0}', space=vmem, size = 0x8000, scoped, tag = 'input window, operand 9, single buffered']
    #allocation9 [shape = 's32[1]{0}', space=sflag, size = 0x4, scoped, tag = 'scoped memory for mnist_fcn_forward.1']
    #allocation10 [shape = 'u8[4096]{0}', space=vmem, size = 0x1000, scoped, tag = 'output window, operand 0, single buffered']
    %16 = vsyncpa [#allocation3], 0
    %17 = vsyncpa [#allocation6], 0
    %18 = vsyncpa [#allocation9], 0
    %19 = vsyncpa [#allocation4], 0
    // Predicated region
    $region2: #{mnist_fcn_forward.1} parent=1 // pred_check
      _
    $region3: #{mnist_fcn_forward.1} parent=1 // pred_check_branch
      %21 = sbr.rel (0) target = $region5
    $region4: #{mnist_fcn_forward.1} parent=1 // pred_region
      _
    $region5: #{mnist_fcn_forward.1} parent=1 // pred_fallthru
      _
    // Predicated region
    $region6: #{mnist_fcn_forward.1} parent=1 // pred_check
      _
    $region7: #{mnist_fcn_forward.1} parent=1 // pred_check_branch
      %23 = sbr.rel (0) target = $region9
    $region8: #{mnist_fcn_forward.1} parent=1 // pred_region
      %s25 = ssub.s32 7168, 7168
      %26 = vsyncadd [#allocation3], %s25
      %s27 = sshll.u32 [#allocation2], 4
      %s28 = int_to_ptr.vmem [resolvable:$true] %s27
      %33 = dma.hbm_to_vmem [thread:$0]  %s1, 7168, %s28, [#allocation3], 64, 64, 4
    $region9: #{mnist_fcn_forward.1} parent=1 // pred_fallthru
      _
    // Predicated region
    $region10: #{mnist_fcn_forward.1} parent=1 // pred_check
      _
    $region11: #{mnist_fcn_forward.1} parent=1 // pred_check_branch
      %35 = sbr.rel (0) target = $region13
    $region12: #{mnist_fcn_forward.1} parent=1 // pred_region
      _
    $region13: #{mnist_fcn_forward.1} parent=1 // pred_fallthru
      _
    // Predicated region
    $region14: #{mnist_fcn_forward.1} parent=1 // pred_check
      _
    $region15: #{mnist_fcn_forward.1} parent=1 // pred_check_branch
      %37 = sbr.rel (0) target = $region17
    $region16: #{mnist_fcn_forward.1} parent=1 // pred_region
      _
    $region17: #{mnist_fcn_forward.1} parent=1 // pred_fallthru
      _
    // Predicated region
    $region18: #{mnist_fcn_forward.1} parent=1 // pred_check
      _
    $region19: #{mnist_fcn_forward.1} parent=1 // pred_check_branch
      %39 = sbr.rel (0) target = $region21
    $region20: #{mnist_fcn_forward.1} parent=1 // pred_region
      _
    $region21: #{mnist_fcn_forward.1} parent=1 // pred_fallthru
      _
    // Predicated region
    $region22: #{mnist_fcn_forward.1} parent=1 // pred_check
      _
    $region23: #{mnist_fcn_forward.1} parent=1 // pred_check_branch
      %41 = sbr.rel (0) target = $region25
    $region24: #{mnist_fcn_forward.1} parent=1 // pred_region
      %s43 = ssub.s32 8192, 8192
      %44 = vsyncadd [#allocation6], %s43
      %s45 = sshll.u32 [#allocation5], 4
      %s46 = int_to_ptr.vmem [resolvable:$true] %s45
      %51 = dma.hbm_to_vmem [thread:$0]  %s5, 8192, %s46, [#allocation6], 256, 256, 16
    $region25: #{mnist_fcn_forward.1} parent=1 // pred_fallthru
      _
    // Predicated region
    $region26: #{mnist_fcn_forward.1} parent=1 // pred_check
      _
    $region27: #{mnist_fcn_forward.1} parent=1 // pred_check_branch
      %53 = sbr.rel (0) target = $region29
    $region28: #{mnist_fcn_forward.1} parent=1 // pred_region
      _
    $region29: #{mnist_fcn_forward.1} parent=1 // pred_fallthru
      _
    // Predicated region
    $region30: #{mnist_fcn_forward.1} parent=1 // pred_check
      _
    $region31: #{mnist_fcn_forward.1} parent=1 // pred_check_branch
      %55 = sbr.rel (0) target = $region33
    $region32: #{mnist_fcn_forward.1} parent=1 // pred_region
      %s57 = ssub.s32 4096, 4096
      %58 = vsyncadd [#allocation6], %s57
      %s59 = sshll.u32 [#allocation7], 4
      %s60 = int_to_ptr.vmem [resolvable:$true] %s59
      %65 = dma.hbm_to_vmem [thread:$0]  %s7, 4096, %s60, [#allocation6], 64, 64, 4
    $region33: #{mnist_fcn_forward.1} parent=1 // pred_fallthru
      _
    // Predicated region
    $region34: #{mnist_fcn_forward.1} parent=1 // pred_check
      _
    $region35: #{mnist_fcn_forward.1} parent=1 // pred_check_branch
      %67 = sbr.rel (0) target = $region37
    $region36: #{mnist_fcn_forward.1} parent=1 // pred_region
      _
    $region37: #{mnist_fcn_forward.1} parent=1 // pred_fallthru
      _
    // Predicated region
    $region38: #{mnist_fcn_forward.1} parent=1 // pred_check
      _
    $region39: #{mnist_fcn_forward.1} parent=1 // pred_check_branch
      %69 = sbr.rel (0) target = $region41
    $region40: #{mnist_fcn_forward.1} parent=1 // pred_region
      %s71 = ssub.s32 1024, 1024
      %72 = vsyncadd [#allocation9], %s71
      %s73 = sshll.u32 [#allocation8], 4
      %s74 = int_to_ptr.vmem [resolvable:$true] %s73
      %79 = dma.hbm_to_vmem [thread:$0]  %s9, 1024, %s74, [#allocation9], 64, 64, 4
    $region41: #{mnist_fcn_forward.1} parent=1 // pred_fallthru
      _
    // Predicated region
    $region42: #{mnist_fcn_forward.1} parent=1 // pred_check
      _
    $region43: #{mnist_fcn_forward.1} parent=1 // pred_check_branch
      %81 = sbr.rel (0) target = $region45
    $region44: #{mnist_fcn_forward.1} parent=1 // pred_region
      _
    $region45: #{mnist_fcn_forward.1} parent=1 // pred_fallthru
      _
    // Predicated region
    $region46: #{mnist_fcn_forward.1} parent=1 // pred_check
      _
    $region47: #{mnist_fcn_forward.1} parent=1 // pred_check_branch
      %83 = sbr.rel (0) target = $region49
    $region48: #{mnist_fcn_forward.1} parent=1 // pred_region
      %84 = dma.done [#allocation3], 7168
    $region49: #{mnist_fcn_forward.1} parent=1 // pred_fallthru
      _
    // Predicated region
    $region50: #{mnist_fcn_forward.1} parent=1 // pred_check
      _
    $region51: #{mnist_fcn_forward.1} parent=1 // pred_check_branch
      %86 = sbr.rel (0) target = $region53
    $region52: #{mnist_fcn_forward.1} parent=1 // pred_region
      %87 = dma.done [#allocation6], 8192
    $region53: #{mnist_fcn_forward.1} parent=1 // pred_fallthru
      _
    // Predicated region
    $region54: #{mnist_fcn_forward.1} parent=1 // pred_check
      _
    $region55: #{mnist_fcn_forward.1} parent=1 // pred_check_branch
      %89 = sbr.rel (0) target = $region57
    $region56: #{mnist_fcn_forward.1} parent=1 // pred_region
      %90 = dma.done [#allocation6], 4096
    $region57: #{mnist_fcn_forward.1} parent=1 // pred_fallthru
      _
    // Predicated region
    $region58: #{mnist_fcn_forward.1} parent=1 // pred_check
      _
    $region59: #{mnist_fcn_forward.1} parent=1 // pred_check_branch
      %92 = sbr.rel (0) target = $region61
    $region60: #{mnist_fcn_forward.1} parent=1 // pred_region
      %93 = dma.done [#allocation9], 1024
    $region61: #{mnist_fcn_forward.1} parent=1 // pred_fallthru
      _
    %v95 = vld [vmem:[%s0] sm:$0xff]
    %v96 = vld [vmem:[%s0 + $0x8] sm:$0xff]
    %v97 = vld [vmem:[%s0 + $0x10] sm:$0xff]
    %v98 = vld [vmem:[%s0 + $0x18] sm:$0xf]
    %v99 = vld [vmem:[#allocation2] sm:$0xf]
    %v100 = vld [vmem:[#allocation2 + $0x4] sm:$0xf]
    %v101 = vld [vmem:[#allocation2 + $0x8] sm:$0xf]
    %v102 = vld [vmem:[#allocation2 + $0xc] sm:$0xf]
    %v103 = vld [vmem:[#allocation2 + $0x10] sm:$0xf]
    %v104 = vld [vmem:[#allocation2 + $0x14] sm:$0xf]
    %v105 = vld [vmem:[#allocation2 + $0x18] sm:$0xf]
    %v106 = vld [vmem:[#allocation2 + $0x1c] sm:$0xf]
    %v107 = vld [vmem:[#allocation2 + $0x20] sm:$0xf]
    %v108 = vld [vmem:[#allocation2 + $0x24] sm:$0xf]
    %v109 = vld [vmem:[#allocation2 + $0x28] sm:$0xf]
    %v110 = vld [vmem:[#allocation2 + $0x2c] sm:$0xf]
    %v111 = vld [vmem:[#allocation2 + $0x30] sm:$0xf]
    %v112 = vld [vmem:[#allocation2 + $0x34] sm:$0xf]
    %v113 = vld [vmem:[#allocation2 + $0x38] sm:$0xf]
    %v114 = vld [vmem:[#allocation2 + $0x3c] sm:$0xf]
    %v115 = vld [vmem:[#allocation2 + $0x40] sm:$0xf]
    %v116 = vld [vmem:[#allocation2 + $0x44] sm:$0xf]
    %v117 = vld [vmem:[#allocation2 + $0x48] sm:$0xf]
    %v118 = vld [vmem:[#allocation2 + $0x4c] sm:$0xf]
    %v119 = vld [vmem:[#allocation2 + $0x50] sm:$0xf]
    %v120 = vld [vmem:[#allocation2 + $0x54] sm:$0xf]
    %v121 = vld [vmem:[#allocation2 + $0x58] sm:$0xf]
    %v122 = vld [vmem:[#allocation2 + $0x5c] sm:$0xf]
    %v123 = vld [vmem:[#allocation2 + $0x60] sm:$0xf]
    %v124 = vld [vmem:[#allocation2 + $0x64] sm:$0xf]
    %v125 = vld [vmem:[#allocation2 + $0x68] sm:$0xf]
    %v126 = vld [vmem:[#allocation2 + $0x6c] sm:$0xf]
    %v127 = vld [vmem:[#allocation2 + $0x70] sm:$0xf]
    %v128 = vld [vmem:[#allocation2 + $0x74] sm:$0xf]
    %v129 = vld [vmem:[#allocation2 + $0x78] sm:$0xf]
    %v130 = vld [vmem:[#allocation2 + $0x7c] sm:$0xf]
    %v131 = vld [vmem:[#allocation2 + $0x80] sm:$0xf]
    %v132 = vld [vmem:[#allocation2 + $0x84] sm:$0xf]
    %v133 = vld [vmem:[#allocation2 + $0x88] sm:$0xf]
    %v134 = vld [vmem:[#allocation2 + $0x8c] sm:$0xf]
    %v135 = vld [vmem:[#allocation2 + $0x90] sm:$0xf]
    %v136 = vld [vmem:[#allocation2 + $0x94] sm:$0xf]
    %v137 = vld [vmem:[#allocation2 + $0x98] sm:$0xf]
    %v138 = vld [vmem:[#allocation2 + $0x9c] sm:$0xf]
    %v139 = vld [vmem:[#allocation2 + $0xa0] sm:$0xf]
    %v140 = vld [vmem:[#allocation2 + $0xa4] sm:$0xf]
    %v141 = vld [vmem:[#allocation2 + $0xa8] sm:$0xf]
    %v142 = vld [vmem:[#allocation2 + $0xac] sm:$0xf]
    %v143 = vld [vmem:[#allocation2 + $0xb0] sm:$0xf]
    %v144 = vld [vmem:[#allocation2 + $0xb4] sm:$0xf]
    %v145 = vld [vmem:[#allocation2 + $0xb8] sm:$0xf]
    %v146 = vld [vmem:[#allocation2 + $0xbc] sm:$0xf]
    %v147 = vld [vmem:[#allocation2 + $0xc0] sm:$0xf]
    %v148 = vld [vmem:[#allocation2 + $0xc4] sm:$0xf]
    %v149 = vld [vmem:[#allocation2 + $0xc8] sm:$0xf]
    %v150 = vld [vmem:[#allocation2 + $0xcc] sm:$0xf]
    %v151 = vld [vmem:[#allocation2 + $0xd0] sm:$0xf]
    %v152 = vld [vmem:[#allocation2 + $0xd4] sm:$0xf]
    %v153 = vld [vmem:[#allocation2 + $0xd8] sm:$0xf]
    %v154 = vld [vmem:[#allocation2 + $0xdc] sm:$0xf]
    %v155 = vld [vmem:[#allocation2 + $0xe0] sm:$0xf]
    %v156 = vld [vmem:[#allocation2 + $0xe4] sm:$0xf]
    %v157 = vld [vmem:[#allocation2 + $0xe8] sm:$0xf]
    %v158 = vld [vmem:[#allocation2 + $0xec] sm:$0xf]
    %v159 = vld [vmem:[#allocation2 + $0xf0] sm:$0xf]
    %v160 = vld [vmem:[#allocation2 + $0xf4] sm:$0xf]
    %v161 = vld [vmem:[#allocation2 + $0xf8] sm:$0xf]
    %v162 = vld [vmem:[#allocation2 + $0xfc] sm:$0xf]
    %v163 = vld [vmem:[#allocation2 + $0x100] sm:$0xf]
    %v164 = vld [vmem:[#allocation2 + $0x104] sm:$0xf]
    %v165 = vld [vmem:[#allocation2 + $0x108] sm:$0xf]
    %v166 = vld [vmem:[#allocation2 + $0x10c] sm:$0xf]
    %v167 = vld [vmem:[#allocation2 + $0x110] sm:$0xf]
    %v168 = vld [vmem:[#allocation2 + $0x114] sm:$0xf]
    %v169 = vld [vmem:[#allocation2 + $0x118] sm:$0xf]
    %v170 = vld [vmem:[#allocation2 + $0x11c] sm:$0xf]
    %v171 = vld [vmem:[#allocation2 + $0x120] sm:$0xf]
    %v172 = vld [vmem:[#allocation2 + $0x124] sm:$0xf]
    %v173 = vld [vmem:[#allocation2 + $0x128] sm:$0xf]
    %v174 = vld [vmem:[#allocation2 + $0x12c] sm:$0xf]
    %v175 = vld [vmem:[#allocation2 + $0x130] sm:$0xf]
    %v176 = vld [vmem:[#allocation2 + $0x134] sm:$0xf]
    %v177 = vld [vmem:[#allocation2 + $0x138] sm:$0xf]
    %v178 = vld [vmem:[#allocation2 + $0x13c] sm:$0xf]
    %v179 = vld [vmem:[#allocation2 + $0x140] sm:$0xf]
    %v180 = vld [vmem:[#allocation2 + $0x144] sm:$0xf]
    %v181 = vld [vmem:[#allocation2 + $0x148] sm:$0xf]
    %v182 = vld [vmem:[#allocation2 + $0x14c] sm:$0xf]
    %v183 = vld [vmem:[#allocation2 + $0x150] sm:$0xf]
    %v184 = vld [vmem:[#allocation2 + $0x154] sm:$0xf]
    %v185 = vld [vmem:[#allocation2 + $0x158] sm:$0xf]
    %v186 = vld [vmem:[#allocation2 + $0x15c] sm:$0xf]
    %v187 = vld [vmem:[#allocation2 + $0x160] sm:$0xf]
    %v188 = vld [vmem:[#allocation2 + $0x164] sm:$0xf]
    %v189 = vld [vmem:[#allocation2 + $0x168] sm:$0xf]
    %v190 = vld [vmem:[#allocation2 + $0x16c] sm:$0xf]
    %v191 = vld [vmem:[#allocation2 + $0x170] sm:$0xf]
    %v192 = vld [vmem:[#allocation2 + $0x174] sm:$0xf]
    %v193 = vld [vmem:[#allocation2 + $0x178] sm:$0xf]
    %v194 = vld [vmem:[#allocation2 + $0x17c] sm:$0xf]
    %v195 = vld [vmem:[#allocation2 + $0x180] sm:$0xf]
    %v196 = vld [vmem:[#allocation2 + $0x184] sm:$0xf]
    %v197 = vld [vmem:[#allocation2 + $0x188] sm:$0xf]
    %v198 = vld [vmem:[#allocation2 + $0x18c] sm:$0xf]
    %v199 = vld [vmem:[#allocation2 + $0x190] sm:$0xf]
    %v200 = vld [vmem:[#allocation2 + $0x194] sm:$0xf]
    %v201 = vld [vmem:[#allocation2 + $0x198] sm:$0xf]
    %v202 = vld [vmem:[#allocation2 + $0x19c] sm:$0xf]
    %v203 = vld [vmem:[#allocation2 + $0x1a0] sm:$0xf]
    %v204 = vld [vmem:[#allocation2 + $0x1a4] sm:$0xf]
    %v205 = vld [vmem:[#allocation2 + $0x1a8] sm:$0xf]
    %v206 = vld [vmem:[#allocation2 + $0x1ac] sm:$0xf]
    %v207 = vld [vmem:[#allocation2 + $0x1b0] sm:$0xf]
    %v208 = vld [vmem:[#allocation2 + $0x1b4] sm:$0xf]
    %v209 = vld [vmem:[#allocation2 + $0x1b8] sm:$0xf]
    %v210 = vld [vmem:[#allocation2 + $0x1bc] sm:$0xf]
    %v211 = vld [vmem:[%s2] sm:$0x1]
    %v213 = vlaneseq
    %v214 = vshrl.u32 %v213, 7
    %v215 = vsub.s32 0, %v214
    %v216 = vrot.slane %v211, %v215
    %v222 = vunpack.c.l.b16 %v95
    %v223 = vunpack.c.h.b16 %v95
    %v224 = vunpack.c.l.b16 %v96
    %v225 = vunpack.c.h.b16 %v96
    %v226 = vunpack.c.l.b16 %v97
    %v227 = vunpack.c.h.b16 %v97
    %v228 = vunpack.c.l.b16 %v98
    %v229 = vpack.c.b16 %v222, %v222
    %v230 = vpack.c.b16 %v223, %v223
    %v231 = vpack.c.b16 %v224, %v224
    %v232 = vpack.c.b16 %v225, %v225
    %v233 = vpack.c.b16 %v226, %v226
    %v234 = vpack.c.b16 %v227, %v227
    %v235 = vpack.c.b16 %v228, %v228
    %v355 = vunpack.c.l.b16 %v99
    %v356 = vunpack.c.l.b16 %v100
    %v357 = vunpack.c.l.b16 %v101
    %v358 = vunpack.c.l.b16 %v102
    %v359 = vunpack.c.l.b16 %v103
    %v360 = vunpack.c.l.b16 %v104
    %v361 = vunpack.c.l.b16 %v105
    %v362 = vunpack.c.l.b16 %v106
    %v363 = vunpack.c.l.b16 %v107
    %v364 = vunpack.c.l.b16 %v108
    %v365 = vunpack.c.l.b16 %v109
    %v366 = vunpack.c.l.b16 %v110
    %v367 = vunpack.c.l.b16 %v111
    %v368 = vunpack.c.l.b16 %v112
    %v369 = vunpack.c.l.b16 %v113
    %v370 = vunpack.c.l.b16 %v114
    %v371 = vunpack.c.l.b16 %v115
    %v372 = vunpack.c.l.b16 %v116
    %v373 = vunpack.c.l.b16 %v117
    %v374 = vunpack.c.l.b16 %v118
    %v375 = vunpack.c.l.b16 %v119
    %v376 = vunpack.c.l.b16 %v120
    %v377 = vunpack.c.l.b16 %v121
    %v378 = vunpack.c.l.b16 %v122
    %v379 = vunpack.c.l.b16 %v123
    %v380 = vunpack.c.l.b16 %v124
    %v381 = vunpack.c.l.b16 %v125
    %v382 = vunpack.c.l.b16 %v126
    %v383 = vunpack.c.l.b16 %v127
    %v384 = vunpack.c.l.b16 %v128
    %v385 = vunpack.c.l.b16 %v129
    %v386 = vunpack.c.l.b16 %v130
    %v387 = vunpack.c.l.b16 %v131
    %v388 = vunpack.c.l.b16 %v132
    %v389 = vunpack.c.l.b16 %v133
    %v390 = vunpack.c.l.b16 %v134
    %v391 = vunpack.c.l.b16 %v135
    %v392 = vunpack.c.l.b16 %v136
    %v393 = vunpack.c.l.b16 %v137
    %v394 = vunpack.c.l.b16 %v138
    %v395 = vunpack.c.l.b16 %v139
    %v396 = vunpack.c.l.b16 %v140
    %v397 = vunpack.c.l.b16 %v141
    %v398 = vunpack.c.l.b16 %v142
    %v399 = vunpack.c.l.b16 %v143
    %v400 = vunpack.c.l.b16 %v144
    %v401 = vunpack.c.l.b16 %v145
    %v402 = vunpack.c.l.b16 %v146
    %v403 = vunpack.c.l.b16 %v147
    %v404 = vunpack.c.l.b16 %v148
    %v405 = vunpack.c.l.b16 %v149
    %v406 = vunpack.c.l.b16 %v150
    %v407 = vunpack.c.l.b16 %v151
    %v408 = vunpack.c.l.b16 %v152
    %v409 = vunpack.c.l.b16 %v153
    %v410 = vunpack.c.l.b16 %v154
    %v411 = vunpack.c.l.b16 %v155
    %v412 = vunpack.c.l.b16 %v156
    %v413 = vunpack.c.l.b16 %v157
    %v414 = vunpack.c.l.b16 %v158
    %v415 = vunpack.c.l.b16 %v159
    %v416 = vunpack.c.l.b16 %v160
    %v417 = vunpack.c.l.b16 %v161
    %v418 = vunpack.c.l.b16 %v162
    %v419 = vunpack.c.l.b16 %v163
    %v420 = vunpack.c.l.b16 %v164
    %v421 = vunpack.c.l.b16 %v165
    %v422 = vunpack.c.l.b16 %v166
    %v423 = vunpack.c.l.b16 %v167
    %v424 = vunpack.c.l.b16 %v168
    %v425 = vunpack.c.l.b16 %v169
    %v426 = vunpack.c.l.b16 %v170
    %v427 = vunpack.c.l.b16 %v171
    %v428 = vunpack.c.l.b16 %v172
    %v429 = vunpack.c.l.b16 %v173
    %v430 = vunpack.c.l.b16 %v174
    %v431 = vunpack.c.l.b16 %v175
    %v432 = vunpack.c.l.b16 %v176
    %v433 = vunpack.c.l.b16 %v177
    %v434 = vunpack.c.l.b16 %v178
    %v435 = vunpack.c.l.b16 %v179
    %v436 = vunpack.c.l.b16 %v180
    %v437 = vunpack.c.l.b16 %v181
    %v438 = vunpack.c.l.b16 %v182
    %v439 = vunpack.c.l.b16 %v183
    %v440 = vunpack.c.l.b16 %v184
    %v441 = vunpack.c.l.b16 %v185
    %v442 = vunpack.c.l.b16 %v186
    %v443 = vunpack.c.l.b16 %v187
    %v444 = vunpack.c.l.b16 %v188
    %v445 = vunpack.c.l.b16 %v189
    %v446 = vunpack.c.l.b16 %v190
    %v447 = vunpack.c.l.b16 %v191
    %v448 = vunpack.c.l.b16 %v192
    %v449 = vunpack.c.l.b16 %v193
    %v450 = vunpack.c.l.b16 %v194
    %v451 = vunpack.c.l.b16 %v195
    %v452 = vunpack.c.l.b16 %v196
    %v453 = vunpack.c.l.b16 %v197
    %v454 = vunpack.c.l.b16 %v198
    %v455 = vunpack.c.l.b16 %v199
    %v456 = vunpack.c.l.b16 %v200
    %v457 = vunpack.c.l.b16 %v201
    %v458 = vunpack.c.l.b16 %v202
    %v459 = vunpack.c.l.b16 %v203
    %v460 = vunpack.c.l.b16 %v204
    %v461 = vunpack.c.l.b16 %v205
    %v462 = vunpack.c.l.b16 %v206
    %v463 = vunpack.c.l.b16 %v207
    %v464 = vunpack.c.l.b16 %v208
    %v465 = vunpack.c.l.b16 %v209
    %v466 = vunpack.c.l.b16 %v210
    %v467 = vpack.c.b16 %v356, %v355
    %v468 = vpack.c.b16 %v358, %v357
    %v469 = vpack.c.b16 %v360, %v359
    %v470 = vpack.c.b16 %v362, %v361
    %v471 = vpack.c.b16 %v364, %v363
    %v472 = vpack.c.b16 %v366, %v365
    %v473 = vpack.c.b16 %v368, %v367
    %v474 = vpack.c.b16 %v370, %v369
    %v475 = vpack.c.b16 %v372, %v371
    %v476 = vpack.c.b16 %v374, %v373
    %v477 = vpack.c.b16 %v376, %v375
    %v478 = vpack.c.b16 %v378, %v377
    %v479 = vpack.c.b16 %v380, %v379
    %v480 = vpack.c.b16 %v382, %v381
    %v481 = vpack.c.b16 %v384, %v383
    %v482 = vpack.c.b16 %v386, %v385
    %v483 = vpack.c.b16 %v388, %v387
    %v484 = vpack.c.b16 %v390, %v389
    %v485 = vpack.c.b16 %v392, %v391
    %v486 = vpack.c.b16 %v394, %v393
    %v487 = vpack.c.b16 %v396, %v395
    %v488 = vpack.c.b16 %v398, %v397
    %v489 = vpack.c.b16 %v400, %v399
    %v490 = vpack.c.b16 %v402, %v401
    %v491 = vpack.c.b16 %v404, %v403
    %v492 = vpack.c.b16 %v406, %v405
    %v493 = vpack.c.b16 %v408, %v407
    %v494 = vpack.c.b16 %v410, %v409
    %v495 = vpack.c.b16 %v412, %v411
    %v496 = vpack.c.b16 %v414, %v413
    %v497 = vpack.c.b16 %v416, %v415
    %v498 = vpack.c.b16 %v418, %v417
    %v499 = vpack.c.b16 %v420, %v419
    %v500 = vpack.c.b16 %v422, %v421
    %v501 = vpack.c.b16 %v424, %v423
    %v502 = vpack.c.b16 %v426, %v425
    %v503 = vpack.c.b16 %v428, %v427
    %v504 = vpack.c.b16 %v430, %v429
    %v505 = vpack.c.b16 %v432, %v431
    %v506 = vpack.c.b16 %v434, %v433
    %v507 = vpack.c.b16 %v436, %v435
    %v508 = vpack.c.b16 %v438, %v437
    %v509 = vpack.c.b16 %v440, %v439
    %v510 = vpack.c.b16 %v442, %v441
    %v511 = vpack.c.b16 %v444, %v443
    %v512 = vpack.c.b16 %v446, %v445
    %v513 = vpack.c.b16 %v448, %v447
    %v514 = vpack.c.b16 %v450, %v449
    %v515 = vpack.c.b16 %v452, %v451
    %v516 = vpack.c.b16 %v454, %v453
    %v517 = vpack.c.b16 %v456, %v455
    %v518 = vpack.c.b16 %v458, %v457
    %v519 = vpack.c.b16 %v460, %v459
    %v520 = vpack.c.b16 %v462, %v461
    %v521 = vpack.c.b16 %v464, %v463
    %v522 = vpack.c.b16 %v466, %v465
    %579 = vmatprep.subr.bf16.mxu0 0
    %580 = vmatpush1.bf16.msra.mxu0 %v467
    %581 = vmatprep.subr.bf16.mxu0 0
    %582 = vmatpush1.bf16.msra.mxu0 %v468
    %583 = vmatprep.subr.bf16.mxu0 0
    %584 = vmatpush1.bf16.msra.mxu0 %v469
    %585 = vmatprep.subr.bf16.mxu0 0
    %586 = vmatpush1.bf16.msra.mxu0 %v470
    %587 = vmatprep.subr.bf16.mxu0 0
    %588 = vmatpush1.bf16.msra.mxu0 %v471
    %589 = vmatprep.subr.bf16.mxu0 0
    %590 = vmatpush1.bf16.msra.mxu0 %v472
    %591 = vmatprep.subr.bf16.mxu0 0
    %592 = vmatpush1.bf16.msra.mxu0 %v473
    %593 = vmatprep.subr.bf16.mxu0 0
    %594 = vmatpush1.bf16.msra.mxu0 %v474
    %595 = vmatprep.subr.bf16.mxu0 0
    %596 = vmatpush1.bf16.msra.mxu0 %v475
    %597 = vmatprep.subr.bf16.mxu0 0
    %598 = vmatpush1.bf16.msra.mxu0 %v476
    %599 = vmatprep.subr.bf16.mxu0 0
    %600 = vmatpush1.bf16.msra.mxu0 %v477
    %601 = vmatprep.subr.bf16.mxu0 0
    %602 = vmatpush1.bf16.msra.mxu0 %v478
    %603 = vmatprep.subr.bf16.mxu0 0
    %604 = vmatpush1.bf16.msra.mxu0 %v479
    %605 = vmatprep.subr.bf16.mxu0 0
    %606 = vmatpush1.bf16.msra.mxu0 %v480
    %607 = vmatprep.subr.bf16.mxu0 0
    %608 = vmatpush1.bf16.msra.mxu0 %v481
    %609 = vmatprep.subr.bf16.mxu0 0
    %610 = vmatpush1.bf16.msra.mxu0 %v482
    %611 = vmatprep.mubr.bf16.mxu0 %v230
    %612 = vmatmul.mubr.bf16.gmra.mrb[0].mxu0 %v229
    %v613 = vpop.f32.mrb[0].mxu0
    %v614 = vadd.f32 %v216, %v613
    %v615 = vpop.f32.mrb[0].mxu0
    %v616 = vpop.f32.mrb[0].mxu0
    %v617 = vpop.f32.mrb[0].mxu0
    %618 = vdwg.mxu0
    %619 = vmatprep.subr.bf16.mxu0 0
    %620 = vmatpush1.bf16.msra.mxu0 %v483
    %621 = vmatprep.subr.bf16.mxu0 0
    %622 = vmatpush1.bf16.msra.mxu0 %v484
    %623 = vmatprep.subr.bf16.mxu0 0
    %624 = vmatpush1.bf16.msra.mxu0 %v485
    %625 = vmatprep.subr.bf16.mxu0 0
    %626 = vmatpush1.bf16.msra.mxu0 %v486
    %627 = vmatprep.subr.bf16.mxu0 0
    %628 = vmatpush1.bf16.msra.mxu0 %v487
    %629 = vmatprep.subr.bf16.mxu0 0
    %630 = vmatpush1.bf16.msra.mxu0 %v488
    %631 = vmatprep.subr.bf16.mxu0 0
    %632 = vmatpush1.bf16.msra.mxu0 %v489
    %633 = vmatprep.subr.bf16.mxu0 0
    %634 = vmatpush1.bf16.msra.mxu0 %v490
    %635 = vmatprep.subr.bf16.mxu0 0
    %636 = vmatpush1.bf16.msra.mxu0 %v491
    %637 = vmatprep.subr.bf16.mxu0 0
    %638 = vmatpush1.bf16.msra.mxu0 %v492
    %639 = vmatprep.subr.bf16.mxu0 0
    %640 = vmatpush1.bf16.msra.mxu0 %v493
    %641 = vmatprep.subr.bf16.mxu0 0
    %642 = vmatpush1.bf16.msra.mxu0 %v494
    %643 = vmatprep.subr.bf16.mxu0 0
    %644 = vmatpush1.bf16.msra.mxu0 %v495
    %645 = vmatprep.subr.bf16.mxu0 0
    %646 = vmatpush1.bf16.msra.mxu0 %v496
    %647 = vmatprep.subr.bf16.mxu0 0
    %648 = vmatpush1.bf16.msra.mxu0 %v497
    %649 = vmatprep.subr.bf16.mxu0 0
    %650 = vmatpush1.bf16.msra.mxu0 %v498
    %651 = vmatprep.mubr.bf16.mxu0 %v232
    %652 = vmatmul.mubr.bf16.gmra.mrb[0].mxu0 %v231
    %v653 = vpop.f32.mrb[0].mxu0
    %v654 = vadd.f32 %v614, %v653
    %v655 = vpop.f32.mrb[0].mxu0
    %v656 = vpop.f32.mrb[0].mxu0
    %v657 = vpop.f32.mrb[0].mxu0
    %658 = vdwg.mxu0
    %659 = vmatprep.subr.bf16.mxu0 0
    %660 = vmatpush1.bf16.msra.mxu0 %v499
    %661 = vmatprep.subr.bf16.mxu0 0
    %662 = vmatpush1.bf16.msra.mxu0 %v500
    %663 = vmatprep.subr.bf16.mxu0 0
    %664 = vmatpush1.bf16.msra.mxu0 %v501
    %665 = vmatprep.subr.bf16.mxu0 0
    %666 = vmatpush1.bf16.msra.mxu0 %v502
    %667 = vmatprep.subr.bf16.mxu0 0
    %668 = vmatpush1.bf16.msra.mxu0 %v503
    %669 = vmatprep.subr.bf16.mxu0 0
    %670 = vmatpush1.bf16.msra.mxu0 %v504
    %671 = vmatprep.subr.bf16.mxu0 0
    %672 = vmatpush1.bf16.msra.mxu0 %v505
    %673 = vmatprep.subr.bf16.mxu0 0
    %674 = vmatpush1.bf16.msra.mxu0 %v506
    %675 = vmatprep.subr.bf16.mxu0 0
    %676 = vmatpush1.bf16.msra.mxu0 %v507
    %677 = vmatprep.subr.bf16.mxu0 0
    %678 = vmatpush1.bf16.msra.mxu0 %v508
    %679 = vmatprep.subr.bf16.mxu0 0
    %680 = vmatpush1.bf16.msra.mxu0 %v509
    %681 = vmatprep.subr.bf16.mxu0 0
    %682 = vmatpush1.bf16.msra.mxu0 %v510
    %683 = vmatprep.subr.bf16.mxu0 0
    %684 = vmatpush1.bf16.msra.mxu0 %v511
    %685 = vmatprep.subr.bf16.mxu0 0
    %686 = vmatpush1.bf16.msra.mxu0 %v512
    %687 = vmatprep.subr.bf16.mxu0 0
    %688 = vmatpush1.bf16.msra.mxu0 %v513
    %689 = vmatprep.subr.bf16.mxu0 0
    %690 = vmatpush1.bf16.msra.mxu0 %v514
    %691 = vmatprep.mubr.bf16.mxu0 %v234
    %692 = vmatmul.mubr.bf16.gmra.mrb[0].mxu0 %v233
    %v693 = vpop.f32.mrb[0].mxu0
    %v694 = vadd.f32 %v654, %v693
    %v695 = vpop.f32.mrb[0].mxu0
    %v696 = vpop.f32.mrb[0].mxu0
    %v697 = vpop.f32.mrb[0].mxu0
    %698 = vdwg.mxu0
    %699 = vmatprep.subr.bf16.mxu0 0
    %700 = vmatpush1.bf16.msra.mxu0 %v515
    %701 = vmatprep.subr.bf16.mxu0 0
    %702 = vmatpush1.bf16.msra.mxu0 %v516
    %703 = vmatprep.subr.bf16.mxu0 0
    %704 = vmatpush1.bf16.msra.mxu0 %v517
    %705 = vmatprep.subr.bf16.mxu0 0
    %706 = vmatpush1.bf16.msra.mxu0 %v518
    %707 = vmatprep.subr.bf16.mxu0 0
    %708 = vmatpush1.bf16.msra.mxu0 %v519
    %709 = vmatprep.subr.bf16.mxu0 0
    %710 = vmatpush1.bf16.msra.mxu0 %v520
    %711 = vmatprep.subr.bf16.mxu0 0
    %712 = vmatpush1.bf16.msra.mxu0 %v521
    %713 = vmatprep.subr.bf16.mxu0 0
    %714 = vmatpush1.bf16.msra.mxu0 %v522
    %715 = vmatprep.subr.bf16.mxu0 0
    %716 = vmatpush1.bf16.msra.mxu0 0
    %717 = vmatprep.subr.bf16.mxu0 0
    %718 = vmatpush1.bf16.msra.mxu0 0
    %719 = vmatprep.subr.bf16.mxu0 0
    %720 = vmatpush1.bf16.msra.mxu0 0
    %721 = vmatprep.subr.bf16.mxu0 0
    %722 = vmatpush1.bf16.msra.mxu0 0
    %723 = vmatprep.subr.bf16.mxu0 0
    %724 = vmatpush1.bf16.msra.mxu0 0
    %725 = vmatprep.subr.bf16.mxu0 0
    %726 = vmatpush1.bf16.msra.mxu0 0
    %727 = vmatprep.subr.bf16.mxu0 0
    %728 = vmatpush1.bf16.msra.mxu0 0
    %729 = vmatprep.subr.bf16.mxu0 0
    %730 = vmatpush1.bf16.msra.mxu0 0
    %731 = vmatprep.mubr.bf16.mxu0 0
    %732 = vmatmul.mubr.bf16.gmra.mrb[0].mxu0 %v235
    %v733 = vpop.f32.mrb[0].mxu0
    %v734 = vadd.f32 %v694, %v733
    %v735 = vpop.f32.mrb[0].mxu0
    %v736 = vpop.f32.mrb[0].mxu0
    %v737 = vpop.f32.mrb[0].mxu0
    %738 = vdwg.mxu0
    %v739 = vmax.f32 %v734, 0.0
    %v740 = vpack.c.bf16 %v739, %v739
    %v741 = vld [vmem:[%s3] sm:$0xff]
    %v742 = vld [vmem:[%s3 + $0x8] sm:$0xff]
    %v743 = vld [vmem:[%s3 + $0x10] sm:$0xff]
    %v744 = vld [vmem:[%s3 + $0x18] sm:$0xff]
    %v745 = vld [vmem:[%s3 + $0x20] sm:$0xff]
    %v746 = vld [vmem:[%s3 + $0x28] sm:$0xff]
    %v747 = vld [vmem:[%s3 + $0x30] sm:$0xff]
    %v748 = vld [vmem:[%s3 + $0x38] sm:$0xff]
    %v749 = vld [vmem:[%s3 + $0x40] sm:$0xff]
    %v750 = vld [vmem:[%s3 + $0x48] sm:$0xff]
    %v751 = vld [vmem:[%s3 + $0x50] sm:$0xff]
    %v752 = vld [vmem:[%s3 + $0x58] sm:$0xff]
    %v753 = vld [vmem:[%s3 + $0x60] sm:$0xff]
    %v754 = vld [vmem:[%s3 + $0x68] sm:$0xff]
    %v755 = vld [vmem:[%s3 + $0x70] sm:$0xff]
    %v756 = vld [vmem:[%s3 + $0x78] sm:$0xff]
    %v757 = vld [vmem:[%s4] sm:$0x3]
    %v759 = vlaneseq
    %v760 = vshrl.u32 %v759, 7
    %v761 = vsub.s32 0, %v760
    %v762 = vrot.slane %v757, %v761
    %v763 = vlaneseq
    %v764 = vshrl.u32 %v763, 7
    %v765 = vsub.s32 1, %v764
    %v766 = vrot.slane %v757, %v765
    %v785 = vunpack.c.l.b16 %v741
    %v786 = vunpack.c.h.b16 %v741
    %v787 = vunpack.c.l.b16 %v742
    %v788 = vunpack.c.h.b16 %v742
    %v789 = vunpack.c.l.b16 %v743
    %v790 = vunpack.c.h.b16 %v743
    %v791 = vunpack.c.l.b16 %v744
    %v792 = vunpack.c.h.b16 %v744
    %v793 = vunpack.c.l.b16 %v745
    %v794 = vunpack.c.h.b16 %v745
    %v795 = vunpack.c.l.b16 %v746
    %v796 = vunpack.c.h.b16 %v746
    %v797 = vunpack.c.l.b16 %v747
    %v798 = vunpack.c.h.b16 %v747
    %v799 = vunpack.c.l.b16 %v748
    %v800 = vunpack.c.h.b16 %v748
    %v801 = vunpack.c.l.b16 %v749
    %v802 = vunpack.c.h.b16 %v749
    %v803 = vunpack.c.l.b16 %v750
    %v804 = vunpack.c.h.b16 %v750
    %v805 = vunpack.c.l.b16 %v751
    %v806 = vunpack.c.h.b16 %v751
    %v807 = vunpack.c.l.b16 %v752
    %v808 = vunpack.c.h.b16 %v752
    %v809 = vunpack.c.l.b16 %v753
    %v810 = vunpack.c.h.b16 %v753
    %v811 = vunpack.c.l.b16 %v754
    %v812 = vunpack.c.h.b16 %v754
    %v813 = vunpack.c.l.b16 %v755
    %v814 = vunpack.c.h.b16 %v755
    %v815 = vunpack.c.l.b16 %v756
    %v816 = vunpack.c.h.b16 %v756
    %v817 = vpack.c.b16 %v787, %v785
    %v818 = vpack.c.b16 %v788, %v786
    %v819 = vpack.c.b16 %v791, %v789
    %v820 = vpack.c.b16 %v792, %v790
    %v821 = vpack.c.b16 %v795, %v793
    %v822 = vpack.c.b16 %v796, %v794
    %v823 = vpack.c.b16 %v799, %v797
    %v824 = vpack.c.b16 %v800, %v798
    %v825 = vpack.c.b16 %v803, %v801
    %v826 = vpack.c.b16 %v804, %v802
    %v827 = vpack.c.b16 %v807, %v805
    %v828 = vpack.c.b16 %v808, %v806
    %v829 = vpack.c.b16 %v811, %v809
    %v830 = vpack.c.b16 %v812, %v810
    %v831 = vpack.c.b16 %v815, %v813
    %v832 = vpack.c.b16 %v816, %v814
    %849 = vmatprep.subr.bf16.mxu0 %v818
    %850 = vmatpush1.bf16.msra.mxu0 %v817
    %851 = vmatprep.subr.bf16.mxu0 %v820
    %852 = vmatpush1.bf16.msra.mxu0 %v819
    %853 = vmatprep.subr.bf16.mxu0 %v822
    %854 = vmatpush1.bf16.msra.mxu0 %v821
    %855 = vmatprep.subr.bf16.mxu0 %v824
    %856 = vmatpush1.bf16.msra.mxu0 %v823
    %857 = vmatprep.subr.bf16.mxu0 %v826
    %858 = vmatpush1.bf16.msra.mxu0 %v825
    %859 = vmatprep.subr.bf16.mxu0 %v828
    %860 = vmatpush1.bf16.msra.mxu0 %v827
    %861 = vmatprep.subr.bf16.mxu0 %v830
    %862 = vmatpush1.bf16.msra.mxu0 %v829
    %863 = vmatprep.subr.bf16.mxu0 %v832
    %864 = vmatpush1.bf16.msra.mxu0 %v831
    %865 = vmatprep.subr.bf16.mxu0 0
    %866 = vmatpush1.bf16.msra.mxu0 0
    %867 = vmatprep.subr.bf16.mxu0 0
    %868 = vmatpush1.bf16.msra.mxu0 0
    %869 = vmatprep.subr.bf16.mxu0 0
    %870 = vmatpush1.bf16.msra.mxu0 0
    %871 = vmatprep.subr.bf16.mxu0 0
    %872 = vmatpush1.bf16.msra.mxu0 0
    %873 = vmatprep.subr.bf16.mxu0 0
    %874 = vmatpush1.bf16.msra.mxu0 0
    %875 = vmatprep.subr.bf16.mxu0 0
    %876 = vmatpush1.bf16.msra.mxu0 0
    %877 = vmatprep.subr.bf16.mxu0 0
    %878 = vmatpush1.bf16.msra.mxu0 0
    %879 = vmatprep.subr.bf16.mxu0 0
    %880 = vmatpush1.bf16.msra.mxu0 0
    %881 = vmatprep.mubr.bf16.mxu0 0
    %882 = vmatmul.mubr.bf16.gmra.mrb[0].mxu0 %v740
    %v883 = vpop.f32.mrb[0].mxu0
    %v884 = vadd.f32 %v762, %v883
    %v885 = vpop.f32.mrb[0].mxu0
    %v886 = vadd.f32 %v766, %v885
    %v887 = vpop.f32.mrb[0].mxu0
    %v888 = vpop.f32.mrb[0].mxu0
    %889 = vdwg.mxu0
    %v890 = vmax.f32 %v884, 0.0
    %v891 = vmax.f32 %v886, 0.0
    %v892 = vpack.c.bf16 %v890, %v890
    %v893 = vpack.c.bf16 %v891, %v891
    %v894 = vld [vmem:[#allocation5] sm:$0xff]
    %v895 = vld [vmem:[#allocation5 + $0x8] sm:$0xff]
    %v896 = vld [vmem:[#allocation5 + $0x10] sm:$0xff]
    %v897 = vld [vmem:[#allocation5 + $0x18] sm:$0xff]
    %v898 = vld [vmem:[#allocation5 + $0x20] sm:$0xff]
    %v899 = vld [vmem:[#allocation5 + $0x28] sm:$0xff]
    %v900 = vld [vmem:[#allocation5 + $0x30] sm:$0xff]
    %v901 = vld [vmem:[#allocation5 + $0x38] sm:$0xff]
    %v902 = vld [vmem:[#allocation5 + $0x40] sm:$0xff]
    %v903 = vld [vmem:[#allocation5 + $0x48] sm:$0xff]
    %v904 = vld [vmem:[#allocation5 + $0x50] sm:$0xff]
    %v905 = vld [vmem:[#allocation5 + $0x58] sm:$0xff]
    %v906 = vld [vmem:[#allocation5 + $0x60] sm:$0xff]
    %v907 = vld [vmem:[#allocation5 + $0x68] sm:$0xff]
    %v908 = vld [vmem:[#allocation5 + $0x70] sm:$0xff]
    %v909 = vld [vmem:[#allocation5 + $0x78] sm:$0xff]
    %v910 = vld [vmem:[#allocation5 + $0x80] sm:$0xff]
    %v911 = vld [vmem:[#allocation5 + $0x88] sm:$0xff]
    %v912 = vld [vmem:[#allocation5 + $0x90] sm:$0xff]
    %v913 = vld [vmem:[#allocation5 + $0x98] sm:$0xff]
    %v914 = vld [vmem:[#allocation5 + $0xa0] sm:$0xff]
    %v915 = vld [vmem:[#allocation5 + $0xa8] sm:$0xff]
    %v916 = vld [vmem:[#allocation5 + $0xb0] sm:$0xff]
    %v917 = vld [vmem:[#allocation5 + $0xb8] sm:$0xff]
    %v918 = vld [vmem:[#allocation5 + $0xc0] sm:$0xff]
    %v919 = vld [vmem:[#allocation5 + $0xc8] sm:$0xff]
    %v920 = vld [vmem:[#allocation5 + $0xd0] sm:$0xff]
    %v921 = vld [vmem:[#allocation5 + $0xd8] sm:$0xff]
    %v922 = vld [vmem:[#allocation5 + $0xe0] sm:$0xff]
    %v923 = vld [vmem:[#allocation5 + $0xe8] sm:$0xff]
    %v924 = vld [vmem:[#allocation5 + $0xf0] sm:$0xff]
    %v925 = vld [vmem:[#allocation5 + $0xf8] sm:$0xff]
    %v926 = vld [vmem:[#allocation5 + $0x100] sm:$0xff]
    %v927 = vld [vmem:[#allocation5 + $0x108] sm:$0xff]
    %v928 = vld [vmem:[#allocation5 + $0x110] sm:$0xff]
    %v929 = vld [vmem:[#allocation5 + $0x118] sm:$0xff]
    %v930 = vld [vmem:[#allocation5 + $0x120] sm:$0xff]
    %v931 = vld [vmem:[#allocation5 + $0x128] sm:$0xff]
    %v932 = vld [vmem:[#allocation5 + $0x130] sm:$0xff]
    %v933 = vld [vmem:[#allocation5 + $0x138] sm:$0xff]
    %v934 = vld [vmem:[#allocation5 + $0x140] sm:$0xff]
    %v935 = vld [vmem:[#allocation5 + $0x148] sm:$0xff]
    %v936 = vld [vmem:[#allocation5 + $0x150] sm:$0xff]
    %v937 = vld [vmem:[#allocation5 + $0x158] sm:$0xff]
    %v938 = vld [vmem:[#allocation5 + $0x160] sm:$0xff]
    %v939 = vld [vmem:[#allocation5 + $0x168] sm:$0xff]
    %v940 = vld [vmem:[#allocation5 + $0x170] sm:$0xff]
    %v941 = vld [vmem:[#allocation5 + $0x178] sm:$0xff]
    %v942 = vld [vmem:[#allocation5 + $0x180] sm:$0xff]
    %v943 = vld [vmem:[#allocation5 + $0x188] sm:$0xff]
    %v944 = vld [vmem:[#allocation5 + $0x190] sm:$0xff]
    %v945 = vld [vmem:[#allocation5 + $0x198] sm:$0xff]
    %v946 = vld [vmem:[#allocation5 + $0x1a0] sm:$0xff]
    %v947 = vld [vmem:[#allocation5 + $0x1a8] sm:$0xff]
    %v948 = vld [vmem:[#allocation5 + $0x1b0] sm:$0xff]
    %v949 = vld [vmem:[#allocation5 + $0x1b8] sm:$0xff]
    %v950 = vld [vmem:[#allocation5 + $0x1c0] sm:$0xff]
    %v951 = vld [vmem:[#allocation5 + $0x1c8] sm:$0xff]
    %v952 = vld [vmem:[#allocation5 + $0x1d0] sm:$0xff]
    %v953 = vld [vmem:[#allocation5 + $0x1d8] sm:$0xff]
    %v954 = vld [vmem:[#allocation5 + $0x1e0] sm:$0xff]
    %v955 = vld [vmem:[#allocation5 + $0x1e8] sm:$0xff]
    %v956 = vld [vmem:[#allocation5 + $0x1f0] sm:$0xff]
    %v957 = vld [vmem:[#allocation5 + $0x1f8] sm:$0xff]
    %v958 = vld [vmem:[%s6] sm:$0xf]
    %v960 = vlaneseq
    %v961 = vshrl.u32 %v960, 7
    %v962 = vsub.s32 0, %v961
    %v963 = vrot.slane %v958, %v962
    %v964 = vlaneseq
    %v965 = vshrl.u32 %v964, 7
    %v966 = vsub.s32 1, %v965
    %v967 = vrot.slane %v958, %v966
    %v968 = vlaneseq
    %v969 = vshrl.u32 %v968, 7
    %v970 = vsub.s32 2, %v969
    %v971 = vrot.slane %v958, %v970
    %v972 = vlaneseq
    %v973 = vshrl.u32 %v972, 7
    %v974 = vsub.s32 3, %v973
    %v975 = vrot.slane %v958, %v974
    %v1044 = vunpack.c.l.b16 %v894
    %v1045 = vunpack.c.h.b16 %v894
    %v1046 = vunpack.c.l.b16 %v895
    %v1047 = vunpack.c.h.b16 %v895
    %v1048 = vunpack.c.l.b16 %v896
    %v1049 = vunpack.c.h.b16 %v896
    %v1050 = vunpack.c.l.b16 %v897
    %v1051 = vunpack.c.h.b16 %v897
    %v1052 = vunpack.c.l.b16 %v898
    %v1053 = vunpack.c.h.b16 %v898
    %v1054 = vunpack.c.l.b16 %v899
    %v1055 = vunpack.c.h.b16 %v899
    %v1056 = vunpack.c.l.b16 %v900
    %v1057 = vunpack.c.h.b16 %v900
    %v1058 = vunpack.c.l.b16 %v901
    %v1059 = vunpack.c.h.b16 %v901
    %v1060 = vunpack.c.l.b16 %v902
    %v1061 = vunpack.c.h.b16 %v902
    %v1062 = vunpack.c.l.b16 %v903
    %v1063 = vunpack.c.h.b16 %v903
    %v1064 = vunpack.c.l.b16 %v904
    %v1065 = vunpack.c.h.b16 %v904
    %v1066 = vunpack.c.l.b16 %v905
    %v1067 = vunpack.c.h.b16 %v905
    %v1068 = vunpack.c.l.b16 %v906
    %v1069 = vunpack.c.h.b16 %v906
    %v1070 = vunpack.c.l.b16 %v907
    %v1071 = vunpack.c.h.b16 %v907
    %v1072 = vunpack.c.l.b16 %v908
    %v1073 = vunpack.c.h.b16 %v908
    %v1074 = vunpack.c.l.b16 %v909
    %v1075 = vunpack.c.h.b16 %v909
    %v1076 = vunpack.c.l.b16 %v910
    %v1077 = vunpack.c.h.b16 %v910
    %v1078 = vunpack.c.l.b16 %v911
    %v1079 = vunpack.c.h.b16 %v911
    %v1080 = vunpack.c.l.b16 %v912
    %v1081 = vunpack.c.h.b16 %v912
    %v1082 = vunpack.c.l.b16 %v913
    %v1083 = vunpack.c.h.b16 %v913
    %v1084 = vunpack.c.l.b16 %v914
    %v1085 = vunpack.c.h.b16 %v914
    %v1086 = vunpack.c.l.b16 %v915
    %v1087 = vunpack.c.h.b16 %v915
    %v1088 = vunpack.c.l.b16 %v916
    %v1089 = vunpack.c.h.b16 %v916
    %v1090 = vunpack.c.l.b16 %v917
    %v1091 = vunpack.c.h.b16 %v917
    %v1092 = vunpack.c.l.b16 %v918
    %v1093 = vunpack.c.h.b16 %v918
    %v1094 = vunpack.c.l.b16 %v919
    %v1095 = vunpack.c.h.b16 %v919
    %v1096 = vunpack.c.l.b16 %v920
    %v1097 = vunpack.c.h.b16 %v920
    %v1098 = vunpack.c.l.b16 %v921
    %v1099 = vunpack.c.h.b16 %v921
    %v1100 = vunpack.c.l.b16 %v922
    %v1101 = vunpack.c.h.b16 %v922
    %v1102 = vunpack.c.l.b16 %v923
    %v1103 = vunpack.c.h.b16 %v923
    %v1104 = vunpack.c.l.b16 %v924
    %v1105 = vunpack.c.h.b16 %v924
    %v1106 = vunpack.c.l.b16 %v925
    %v1107 = vunpack.c.h.b16 %v925
    %v1108 = vunpack.c.l.b16 %v926
    %v1109 = vunpack.c.h.b16 %v926
    %v1110 = vunpack.c.l.b16 %v927
    %v1111 = vunpack.c.h.b16 %v927
    %v1112 = vunpack.c.l.b16 %v928
    %v1113 = vunpack.c.h.b16 %v928
    %v1114 = vunpack.c.l.b16 %v929
    %v1115 = vunpack.c.h.b16 %v929
    %v1116 = vunpack.c.l.b16 %v930
    %v1117 = vunpack.c.h.b16 %v930
    %v1118 = vunpack.c.l.b16 %v931
    %v1119 = vunpack.c.h.b16 %v931
    %v1120 = vunpack.c.l.b16 %v932
    %v1121 = vunpack.c.h.b16 %v932
    %v1122 = vunpack.c.l.b16 %v933
    %v1123 = vunpack.c.h.b16 %v933
    %v1124 = vunpack.c.l.b16 %v934
    %v1125 = vunpack.c.h.b16 %v934
    %v1126 = vunpack.c.l.b16 %v935
    %v1127 = vunpack.c.h.b16 %v935
    %v1128 = vunpack.c.l.b16 %v936
    %v1129 = vunpack.c.h.b16 %v936
    %v1130 = vunpack.c.l.b16 %v937
    %v1131 = vunpack.c.h.b16 %v937
    %v1132 = vunpack.c.l.b16 %v938
    %v1133 = vunpack.c.h.b16 %v938
    %v1134 = vunpack.c.l.b16 %v939
    %v1135 = vunpack.c.h.b16 %v939
    %v1136 = vunpack.c.l.b16 %v940
    %v1137 = vunpack.c.h.b16 %v940
    %v1138 = vunpack.c.l.b16 %v941
    %v1139 = vunpack.c.h.b16 %v941
    %v1140 = vunpack.c.l.b16 %v942
    %v1141 = vunpack.c.h.b16 %v942
    %v1142 = vunpack.c.l.b16 %v943
    %v1143 = vunpack.c.h.b16 %v943
    %v1144 = vunpack.c.l.b16 %v944
    %v1145 = vunpack.c.h.b16 %v944
    %v1146 = vunpack.c.l.b16 %v945
    %v1147 = vunpack.c.h.b16 %v945
    %v1148 = vunpack.c.l.b16 %v946
    %v1149 = vunpack.c.h.b16 %v946
    %v1150 = vunpack.c.l.b16 %v947
    %v1151 = vunpack.c.h.b16 %v947
    %v1152 = vunpack.c.l.b16 %v948
    %v1153 = vunpack.c.h.b16 %v948
    %v1154 = vunpack.c.l.b16 %v949
    %v1155 = vunpack.c.h.b16 %v949
    %v1156 = vunpack.c.l.b16 %v950
    %v1157 = vunpack.c.h.b16 %v950
    %v1158 = vunpack.c.l.b16 %v951
    %v1159 = vunpack.c.h.b16 %v951
    %v1160 = vunpack.c.l.b16 %v952
    %v1161 = vunpack.c.h.b16 %v952
    %v1162 = vunpack.c.l.b16 %v953
    %v1163 = vunpack.c.h.b16 %v953
    %v1164 = vunpack.c.l.b16 %v954
    %v1165 = vunpack.c.h.b16 %v954
    %v1166 = vunpack.c.l.b16 %v955
    %v1167 = vunpack.c.h.b16 %v955
    %v1168 = vunpack.c.l.b16 %v956
    %v1169 = vunpack.c.h.b16 %v956
    %v1170 = vunpack.c.l.b16 %v957
    %v1171 = vunpack.c.h.b16 %v957
    %v1172 = vpack.c.b16 %v1048, %v1044
    %v1173 = vpack.c.b16 %v1049, %v1045
    %v1174 = vpack.c.b16 %v1050, %v1046
    %v1175 = vpack.c.b16 %v1051, %v1047
    %v1176 = vpack.c.b16 %v1056, %v1052
    %v1177 = vpack.c.b16 %v1057, %v1053
    %v1178 = vpack.c.b16 %v1058, %v1054
    %v1179 = vpack.c.b16 %v1059, %v1055
    %v1180 = vpack.c.b16 %v1064, %v1060
    %v1181 = vpack.c.b16 %v1065, %v1061
    %v1182 = vpack.c.b16 %v1066, %v1062
    %v1183 = vpack.c.b16 %v1067, %v1063
    %v1184 = vpack.c.b16 %v1072, %v1068
    %v1185 = vpack.c.b16 %v1073, %v1069
    %v1186 = vpack.c.b16 %v1074, %v1070
    %v1187 = vpack.c.b16 %v1075, %v1071
    %v1188 = vpack.c.b16 %v1080, %v1076
    %v1189 = vpack.c.b16 %v1081, %v1077
    %v1190 = vpack.c.b16 %v1082, %v1078
    %v1191 = vpack.c.b16 %v1083, %v1079
    %v1192 = vpack.c.b16 %v1088, %v1084
    %v1193 = vpack.c.b16 %v1089, %v1085
    %v1194 = vpack.c.b16 %v1090, %v1086
    %v1195 = vpack.c.b16 %v1091, %v1087
    %v1196 = vpack.c.b16 %v1096, %v1092
    %v1197 = vpack.c.b16 %v1097, %v1093
    %v1198 = vpack.c.b16 %v1098, %v1094
    %v1199 = vpack.c.b16 %v1099, %v1095
    %v1200 = vpack.c.b16 %v1104, %v1100
    %v1201 = vpack.c.b16 %v1105, %v1101
    %v1202 = vpack.c.b16 %v1106, %v1102
    %v1203 = vpack.c.b16 %v1107, %v1103
    %v1204 = vpack.c.b16 %v1112, %v1108
    %v1205 = vpack.c.b16 %v1113, %v1109
    %v1206 = vpack.c.b16 %v1114, %v1110
    %v1207 = vpack.c.b16 %v1115, %v1111
    %v1208 = vpack.c.b16 %v1120, %v1116
    %v1209 = vpack.c.b16 %v1121, %v1117
    %v1210 = vpack.c.b16 %v1122, %v1118
    %v1211 = vpack.c.b16 %v1123, %v1119
    %v1212 = vpack.c.b16 %v1128, %v1124
    %v1213 = vpack.c.b16 %v1129, %v1125
    %v1214 = vpack.c.b16 %v1130, %v1126
    %v1215 = vpack.c.b16 %v1131, %v1127
    %v1216 = vpack.c.b16 %v1136, %v1132
    %v1217 = vpack.c.b16 %v1137, %v1133
    %v1218 = vpack.c.b16 %v1138, %v1134
    %v1219 = vpack.c.b16 %v1139, %v1135
    %v1220 = vpack.c.b16 %v1144, %v1140
    %v1221 = vpack.c.b16 %v1145, %v1141
    %v1222 = vpack.c.b16 %v1146, %v1142
    %v1223 = vpack.c.b16 %v1147, %v1143
    %v1224 = vpack.c.b16 %v1152, %v1148
    %v1225 = vpack.c.b16 %v1153, %v1149
    %v1226 = vpack.c.b16 %v1154, %v1150
    %v1227 = vpack.c.b16 %v1155, %v1151
    %v1228 = vpack.c.b16 %v1160, %v1156
    %v1229 = vpack.c.b16 %v1161, %v1157
    %v1230 = vpack.c.b16 %v1162, %v1158
    %v1231 = vpack.c.b16 %v1163, %v1159
    %v1232 = vpack.c.b16 %v1168, %v1164
    %v1233 = vpack.c.b16 %v1169, %v1165
    %v1234 = vpack.c.b16 %v1170, %v1166
    %v1235 = vpack.c.b16 %v1171, %v1167
    %1300 = vmatprep.subr.bf16.mxu0 %v1173
    %1301 = vmatpush1.bf16.msra.mxu0 %v1172
    %1302 = vmatprep.subr.bf16.mxu0 %v1177
    %1303 = vmatpush1.bf16.msra.mxu0 %v1176
    %1304 = vmatprep.subr.bf16.mxu0 %v1181
    %1305 = vmatpush1.bf16.msra.mxu0 %v1180
    %1306 = vmatprep.subr.bf16.mxu0 %v1185
    %1307 = vmatpush1.bf16.msra.mxu0 %v1184
    %1308 = vmatprep.subr.bf16.mxu0 %v1189
    %1309 = vmatpush1.bf16.msra.mxu0 %v1188
    %1310 = vmatprep.subr.bf16.mxu0 %v1193
    %1311 = vmatpush1.bf16.msra.mxu0 %v1192
    %1312 = vmatprep.subr.bf16.mxu0 %v1197
    %1313 = vmatpush1.bf16.msra.mxu0 %v1196
    %1314 = vmatprep.subr.bf16.mxu0 %v1201
    %1315 = vmatpush1.bf16.msra.mxu0 %v1200
    %1316 = vmatprep.subr.bf16.mxu0 %v1205
    %1317 = vmatpush1.bf16.msra.mxu0 %v1204
    %1318 = vmatprep.subr.bf16.mxu0 %v1209
    %1319 = vmatpush1.bf16.msra.mxu0 %v1208
    %1320 = vmatprep.subr.bf16.mxu0 %v1213
    %1321 = vmatpush1.bf16.msra.mxu0 %v1212
    %1322 = vmatprep.subr.bf16.mxu0 %v1217
    %1323 = vmatpush1.bf16.msra.mxu0 %v1216
    %1324 = vmatprep.subr.bf16.mxu0 %v1221
    %1325 = vmatpush1.bf16.msra.mxu0 %v1220
    %1326 = vmatprep.subr.bf16.mxu0 %v1225
    %1327 = vmatpush1.bf16.msra.mxu0 %v1224
    %1328 = vmatprep.subr.bf16.mxu0 %v1229
    %1329 = vmatpush1.bf16.msra.mxu0 %v1228
    %1330 = vmatprep.subr.bf16.mxu0 %v1233
    %1331 = vmatpush1.bf16.msra.mxu0 %v1232
    %1332 = vmatprep.mubr.bf16.mxu0 %v893
    %1333 = vmatmul.mubr.bf16.gmra.mrb[0].mxu0 %v892
    %v1334 = vpop.f32.mrb[0].mxu0
    %v1335 = vadd.f32 %v963, %v1334
    %v1336 = vpop.f32.mrb[0].mxu0
    %v1337 = vadd.f32 %v967, %v1336
    %v1338 = vpop.f32.mrb[0].mxu0
    %v1339 = vpop.f32.mrb[0].mxu0
    %1340 = vdwg.mxu0
    %1341 = vmatprep.subr.bf16.mxu0 %v1175
    %1342 = vmatpush1.bf16.msra.mxu0 %v1174
    %1343 = vmatprep.subr.bf16.mxu0 %v1179
    %1344 = vmatpush1.bf16.msra.mxu0 %v1178
    %1345 = vmatprep.subr.bf16.mxu0 %v1183
    %1346 = vmatpush1.bf16.msra.mxu0 %v1182
    %1347 = vmatprep.subr.bf16.mxu0 %v1187
    %1348 = vmatpush1.bf16.msra.mxu0 %v1186
    %1349 = vmatprep.subr.bf16.mxu0 %v1191
    %1350 = vmatpush1.bf16.msra.mxu0 %v1190
    %1351 = vmatprep.subr.bf16.mxu0 %v1195
    %1352 = vmatpush1.bf16.msra.mxu0 %v1194
    %1353 = vmatprep.subr.bf16.mxu0 %v1199
    %1354 = vmatpush1.bf16.msra.mxu0 %v1198
    %1355 = vmatprep.subr.bf16.mxu0 %v1203
    %1356 = vmatpush1.bf16.msra.mxu0 %v1202
    %1357 = vmatprep.subr.bf16.mxu0 %v1207
    %1358 = vmatpush1.bf16.msra.mxu0 %v1206
    %1359 = vmatprep.subr.bf16.mxu0 %v1211
    %1360 = vmatpush1.bf16.msra.mxu0 %v1210
    %1361 = vmatprep.subr.bf16.mxu0 %v1215
    %1362 = vmatpush1.bf16.msra.mxu0 %v1214
    %1363 = vmatprep.subr.bf16.mxu0 %v1219
    %1364 = vmatpush1.bf16.msra.mxu0 %v1218
    %1365 = vmatprep.subr.bf16.mxu0 %v1223
    %1366 = vmatpush1.bf16.msra.mxu0 %v1222
    %1367 = vmatprep.subr.bf16.mxu0 %v1227
    %1368 = vmatpush1.bf16.msra.mxu0 %v1226
    %1369 = vmatprep.subr.bf16.mxu0 %v1231
    %1370 = vmatpush1.bf16.msra.mxu0 %v1230
    %1371 = vmatprep.subr.bf16.mxu0 %v1235
    %1372 = vmatpush1.bf16.msra.mxu0 %v1234
    %1373 = vmatprep.mubr.bf16.mxu0 %v893
    %1374 = vmatmul.mubr.bf16.gmra.mrb[0].mxu0 %v892
    %v1375 = vpop.f32.mrb[0].mxu0
    %v1376 = vadd.f32 %v971, %v1375
    %v1377 = vpop.f32.mrb[0].mxu0
    %v1378 = vadd.f32 %v975, %v1377
    %v1379 = vpop.f32.mrb[0].mxu0
    %v1380 = vpop.f32.mrb[0].mxu0
    %1381 = vdwg.mxu0
    %v1382 = vmax.f32 %v1335, 0.0
    %v1383 = vmax.f32 %v1337, 0.0
    %v1384 = vmax.f32 %v1376, 0.0
    %v1385 = vmax.f32 %v1378, 0.0
    %v1386 = vpack.c.bf16 %v1382, %v1382
    %v1387 = vpack.c.bf16 %v1383, %v1383
    %v1388 = vpack.c.bf16 %v1384, %v1384
    %v1389 = vpack.c.bf16 %v1385, %v1385
    %v1390 = vld [vmem:[#allocation7] sm:$0xf]
    %v1391 = vld [vmem:[#allocation7 + $0x4] sm:$0xf]
    %v1392 = vld [vmem:[#allocation7 + $0x8] sm:$0xf]
    %v1393 = vld [vmem:[#allocation7 + $0xc] sm:$0xf]
    %v1394 = vld [vmem:[#allocation7 + $0x10] sm:$0xf]
    %v1395 = vld [vmem:[#allocation7 + $0x14] sm:$0xf]
    %v1396 = vld [vmem:[#allocation7 + $0x18] sm:$0xf]
    %v1397 = vld [vmem:[#allocation7 + $0x1c] sm:$0xf]
    %v1398 = vld [vmem:[#allocation7 + $0x20] sm:$0xf]
    %v1399 = vld [vmem:[#allocation7 + $0x24] sm:$0xf]
    %v1400 = vld [vmem:[#allocation7 + $0x28] sm:$0xf]
    %v1401 = vld [vmem:[#allocation7 + $0x2c] sm:$0xf]
    %v1402 = vld [vmem:[#allocation7 + $0x30] sm:$0xf]
    %v1403 = vld [vmem:[#allocation7 + $0x34] sm:$0xf]
    %v1404 = vld [vmem:[#allocation7 + $0x38] sm:$0xf]
    %v1405 = vld [vmem:[#allocation7 + $0x3c] sm:$0xf]
    %v1406 = vld [vmem:[#allocation7 + $0x40] sm:$0xf]
    %v1407 = vld [vmem:[#allocation7 + $0x44] sm:$0xf]
    %v1408 = vld [vmem:[#allocation7 + $0x48] sm:$0xf]
    %v1409 = vld [vmem:[#allocation7 + $0x4c] sm:$0xf]
    %v1410 = vld [vmem:[#allocation7 + $0x50] sm:$0xf]
    %v1411 = vld [vmem:[#allocation7 + $0x54] sm:$0xf]
    %v1412 = vld [vmem:[#allocation7 + $0x58] sm:$0xf]
    %v1413 = vld [vmem:[#allocation7 + $0x5c] sm:$0xf]
    %v1414 = vld [vmem:[#allocation7 + $0x60] sm:$0xf]
    %v1415 = vld [vmem:[#allocation7 + $0x64] sm:$0xf]
    %v1416 = vld [vmem:[#allocation7 + $0x68] sm:$0xf]
    %v1417 = vld [vmem:[#allocation7 + $0x6c] sm:$0xf]
    %v1418 = vld [vmem:[#allocation7 + $0x70] sm:$0xf]
    %v1419 = vld [vmem:[#allocation7 + $0x74] sm:$0xf]
    %v1420 = vld [vmem:[#allocation7 + $0x78] sm:$0xf]
    %v1421 = vld [vmem:[#allocation7 + $0x7c] sm:$0xf]
    %v1422 = vld [vmem:[#allocation7 + $0x80] sm:$0xf]
    %v1423 = vld [vmem:[#allocation7 + $0x84] sm:$0xf]
    %v1424 = vld [vmem:[#allocation7 + $0x88] sm:$0xf]
    %v1425 = vld [vmem:[#allocation7 + $0x8c] sm:$0xf]
    %v1426 = vld [vmem:[#allocation7 + $0x90] sm:$0xf]
    %v1427 = vld [vmem:[#allocation7 + $0x94] sm:$0xf]
    %v1428 = vld [vmem:[#allocation7 + $0x98] sm:$0xf]
    %v1429 = vld [vmem:[#allocation7 + $0x9c] sm:$0xf]
    %v1430 = vld [vmem:[#allocation7 + $0xa0] sm:$0xf]
    %v1431 = vld [vmem:[#allocation7 + $0xa4] sm:$0xf]
    %v1432 = vld [vmem:[#allocation7 + $0xa8] sm:$0xf]
    %v1433 = vld [vmem:[#allocation7 + $0xac] sm:$0xf]
    %v1434 = vld [vmem:[#allocation7 + $0xb0] sm:$0xf]
    %v1435 = vld [vmem:[#allocation7 + $0xb4] sm:$0xf]
    %v1436 = vld [vmem:[#allocation7 + $0xb8] sm:$0xf]
    %v1437 = vld [vmem:[#allocation7 + $0xbc] sm:$0xf]
    %v1438 = vld [vmem:[#allocation7 + $0xc0] sm:$0xf]
    %v1439 = vld [vmem:[#allocation7 + $0xc4] sm:$0xf]
    %v1440 = vld [vmem:[#allocation7 + $0xc8] sm:$0xf]
    %v1441 = vld [vmem:[#allocation7 + $0xcc] sm:$0xf]
    %v1442 = vld [vmem:[#allocation7 + $0xd0] sm:$0xf]
    %v1443 = vld [vmem:[#allocation7 + $0xd4] sm:$0xf]
    %v1444 = vld [vmem:[#allocation7 + $0xd8] sm:$0xf]
    %v1445 = vld [vmem:[#allocation7 + $0xdc] sm:$0xf]
    %v1446 = vld [vmem:[#allocation7 + $0xe0] sm:$0xf]
    %v1447 = vld [vmem:[#allocation7 + $0xe4] sm:$0xf]
    %v1448 = vld [vmem:[#allocation7 + $0xe8] sm:$0xf]
    %v1449 = vld [vmem:[#allocation7 + $0xec] sm:$0xf]
    %v1450 = vld [vmem:[#allocation7 + $0xf0] sm:$0xf]
    %v1451 = vld [vmem:[#allocation7 + $0xf4] sm:$0xf]
    %v1452 = vld [vmem:[#allocation7 + $0xf8] sm:$0xf]
    %v1453 = vld [vmem:[#allocation7 + $0xfc] sm:$0xf]
    %v1454 = vld [vmem:[%s8] sm:$0x1]
    %v1456 = vlaneseq
    %v1457 = vshrl.u32 %v1456, 7
    %v1458 = vsub.s32 0, %v1457
    %v1459 = vrot.slane %v1454, %v1458
    %v1525 = vunpack.c.l.b16 %v1390
    %v1526 = vunpack.c.l.b16 %v1391
    %v1527 = vunpack.c.l.b16 %v1392
    %v1528 = vunpack.c.l.b16 %v1393
    %v1529 = vunpack.c.l.b16 %v1394
    %v1530 = vunpack.c.l.b16 %v1395
    %v1531 = vunpack.c.l.b16 %v1396
    %v1532 = vunpack.c.l.b16 %v1397
    %v1533 = vunpack.c.l.b16 %v1398
    %v1534 = vunpack.c.l.b16 %v1399
    %v1535 = vunpack.c.l.b16 %v1400
    %v1536 = vunpack.c.l.b16 %v1401
    %v1537 = vunpack.c.l.b16 %v1402
    %v1538 = vunpack.c.l.b16 %v1403
    %v1539 = vunpack.c.l.b16 %v1404
    %v1540 = vunpack.c.l.b16 %v1405
    %v1541 = vunpack.c.l.b16 %v1406
    %v1542 = vunpack.c.l.b16 %v1407
    %v1543 = vunpack.c.l.b16 %v1408
    %v1544 = vunpack.c.l.b16 %v1409
    %v1545 = vunpack.c.l.b16 %v1410
    %v1546 = vunpack.c.l.b16 %v1411
    %v1547 = vunpack.c.l.b16 %v1412
    %v1548 = vunpack.c.l.b16 %v1413
    %v1549 = vunpack.c.l.b16 %v1414
    %v1550 = vunpack.c.l.b16 %v1415
    %v1551 = vunpack.c.l.b16 %v1416
    %v1552 = vunpack.c.l.b16 %v1417
    %v1553 = vunpack.c.l.b16 %v1418
    %v1554 = vunpack.c.l.b16 %v1419
    %v1555 = vunpack.c.l.b16 %v1420
    %v1556 = vunpack.c.l.b16 %v1421
    %v1557 = vunpack.c.l.b16 %v1422
    %v1558 = vunpack.c.l.b16 %v1423
    %v1559 = vunpack.c.l.b16 %v1424
    %v1560 = vunpack.c.l.b16 %v1425
    %v1561 = vunpack.c.l.b16 %v1426
    %v1562 = vunpack.c.l.b16 %v1427
    %v1563 = vunpack.c.l.b16 %v1428
    %v1564 = vunpack.c.l.b16 %v1429
    %v1565 = vunpack.c.l.b16 %v1430
    %v1566 = vunpack.c.l.b16 %v1431
    %v1567 = vunpack.c.l.b16 %v1432
    %v1568 = vunpack.c.l.b16 %v1433
    %v1569 = vunpack.c.l.b16 %v1434
    %v1570 = vunpack.c.l.b16 %v1435
    %v1571 = vunpack.c.l.b16 %v1436
    %v1572 = vunpack.c.l.b16 %v1437
    %v1573 = vunpack.c.l.b16 %v1438
    %v1574 = vunpack.c.l.b16 %v1439
    %v1575 = vunpack.c.l.b16 %v1440
    %v1576 = vunpack.c.l.b16 %v1441
    %v1577 = vunpack.c.l.b16 %v1442
    %v1578 = vunpack.c.l.b16 %v1443
    %v1579 = vunpack.c.l.b16 %v1444
    %v1580 = vunpack.c.l.b16 %v1445
    %v1581 = vunpack.c.l.b16 %v1446
    %v1582 = vunpack.c.l.b16 %v1447
    %v1583 = vunpack.c.l.b16 %v1448
    %v1584 = vunpack.c.l.b16 %v1449
    %v1585 = vunpack.c.l.b16 %v1450
    %v1586 = vunpack.c.l.b16 %v1451
    %v1587 = vunpack.c.l.b16 %v1452
    %v1588 = vunpack.c.l.b16 %v1453
    %v1589 = vpack.c.b16 %v1526, %v1525
    %v1590 = vpack.c.b16 %v1528, %v1527
    %v1591 = vpack.c.b16 %v1530, %v1529
    %v1592 = vpack.c.b16 %v1532, %v1531
    %v1593 = vpack.c.b16 %v1534, %v1533
    %v1594 = vpack.c.b16 %v1536, %v1535
    %v1595 = vpack.c.b16 %v1538, %v1537
    %v1596 = vpack.c.b16 %v1540, %v1539
    %v1597 = vpack.c.b16 %v1542, %v1541
    %v1598 = vpack.c.b16 %v1544, %v1543
    %v1599 = vpack.c.b16 %v1546, %v1545
    %v1600 = vpack.c.b16 %v1548, %v1547
    %v1601 = vpack.c.b16 %v1550, %v1549
    %v1602 = vpack.c.b16 %v1552, %v1551
    %v1603 = vpack.c.b16 %v1554, %v1553
    %v1604 = vpack.c.b16 %v1556, %v1555
    %v1605 = vpack.c.b16 %v1558, %v1557
    %v1606 = vpack.c.b16 %v1560, %v1559
    %v1607 = vpack.c.b16 %v1562, %v1561
    %v1608 = vpack.c.b16 %v1564, %v1563
    %v1609 = vpack.c.b16 %v1566, %v1565
    %v1610 = vpack.c.b16 %v1568, %v1567
    %v1611 = vpack.c.b16 %v1570, %v1569
    %v1612 = vpack.c.b16 %v1572, %v1571
    %v1613 = vpack.c.b16 %v1574, %v1573
    %v1614 = vpack.c.b16 %v1576, %v1575
    %v1615 = vpack.c.b16 %v1578, %v1577
    %v1616 = vpack.c.b16 %v1580, %v1579
    %v1617 = vpack.c.b16 %v1582, %v1581
    %v1618 = vpack.c.b16 %v1584, %v1583
    %v1619 = vpack.c.b16 %v1586, %v1585
    %v1620 = vpack.c.b16 %v1588, %v1587
    %1653 = vmatprep.subr.bf16.mxu0 0
    %1654 = vmatpush1.bf16.msra.mxu0 %v1589
    %1655 = vmatprep.subr.bf16.mxu0 0
    %1656 = vmatpush1.bf16.msra.mxu0 %v1590
    %1657 = vmatprep.subr.bf16.mxu0 0
    %1658 = vmatpush1.bf16.msra.mxu0 %v1591
    %1659 = vmatprep.subr.bf16.mxu0 0
    %1660 = vmatpush1.bf16.msra.mxu0 %v1592
    %1661 = vmatprep.subr.bf16.mxu0 0
    %1662 = vmatpush1.bf16.msra.mxu0 %v1593
    %1663 = vmatprep.subr.bf16.mxu0 0
    %1664 = vmatpush1.bf16.msra.mxu0 %v1594
    %1665 = vmatprep.subr.bf16.mxu0 0
    %1666 = vmatpush1.bf16.msra.mxu0 %v1595
    %1667 = vmatprep.subr.bf16.mxu0 0
    %1668 = vmatpush1.bf16.msra.mxu0 %v1596
    %1669 = vmatprep.subr.bf16.mxu0 0
    %1670 = vmatpush1.bf16.msra.mxu0 %v1597
    %1671 = vmatprep.subr.bf16.mxu0 0
    %1672 = vmatpush1.bf16.msra.mxu0 %v1598
    %1673 = vmatprep.subr.bf16.mxu0 0
    %1674 = vmatpush1.bf16.msra.mxu0 %v1599
    %1675 = vmatprep.subr.bf16.mxu0 0
    %1676 = vmatpush1.bf16.msra.mxu0 %v1600
    %1677 = vmatprep.subr.bf16.mxu0 0
    %1678 = vmatpush1.bf16.msra.mxu0 %v1601
    %1679 = vmatprep.subr.bf16.mxu0 0
    %1680 = vmatpush1.bf16.msra.mxu0 %v1602
    %1681 = vmatprep.subr.bf16.mxu0 0
    %1682 = vmatpush1.bf16.msra.mxu0 %v1603
    %1683 = vmatprep.subr.bf16.mxu0 0
    %1684 = vmatpush1.bf16.msra.mxu0 %v1604
    %1685 = vmatprep.mubr.bf16.mxu0 %v1387
    %1686 = vmatmul.mubr.bf16.gmra.mrb[0].mxu0 %v1386
    %v1687 = vpop.f32.mrb[0].mxu0
    %v1688 = vadd.f32 %v1459, %v1687
    %v1689 = vpop.f32.mrb[0].mxu0
    %v1690 = vpop.f32.mrb[0].mxu0
    %v1691 = vpop.f32.mrb[0].mxu0
    %1692 = vdwg.mxu0
    %1693 = vmatprep.subr.bf16.mxu0 0
    %1694 = vmatpush1.bf16.msra.mxu0 %v1605
    %1695 = vmatprep.subr.bf16.mxu0 0
    %1696 = vmatpush1.bf16.msra.mxu0 %v1606
    %1697 = vmatprep.subr.bf16.mxu0 0
    %1698 = vmatpush1.bf16.msra.mxu0 %v1607
    %1699 = vmatprep.subr.bf16.mxu0 0
    %1700 = vmatpush1.bf16.msra.mxu0 %v1608
    %1701 = vmatprep.subr.bf16.mxu0 0
    %1702 = vmatpush1.bf16.msra.mxu0 %v1609
    %1703 = vmatprep.subr.bf16.mxu0 0
    %1704 = vmatpush1.bf16.msra.mxu0 %v1610
    %1705 = vmatprep.subr.bf16.mxu0 0
    %1706 = vmatpush1.bf16.msra.mxu0 %v1611
    %1707 = vmatprep.subr.bf16.mxu0 0
    %1708 = vmatpush1.bf16.msra.mxu0 %v1612
    %1709 = vmatprep.subr.bf16.mxu0 0
    %1710 = vmatpush1.bf16.msra.mxu0 %v1613
    %1711 = vmatprep.subr.bf16.mxu0 0
    %1712 = vmatpush1.bf16.msra.mxu0 %v1614
    %1713 = vmatprep.subr.bf16.mxu0 0
    %1714 = vmatpush1.bf16.msra.mxu0 %v1615
    %1715 = vmatprep.subr.bf16.mxu0 0
    %1716 = vmatpush1.bf16.msra.mxu0 %v1616
    %1717 = vmatprep.subr.bf16.mxu0 0
    %1718 = vmatpush1.bf16.msra.mxu0 %v1617
    %1719 = vmatprep.subr.bf16.mxu0 0
    %1720 = vmatpush1.bf16.msra.mxu0 %v1618
    %1721 = vmatprep.subr.bf16.mxu0 0
    %1722 = vmatpush1.bf16.msra.mxu0 %v1619
    %1723 = vmatprep.subr.bf16.mxu0 0
    %1724 = vmatpush1.bf16.msra.mxu0 %v1620
    %1725 = vmatprep.mubr.bf16.mxu0 %v1389
    %1726 = vmatmul.mubr.bf16.gmra.mrb[0].mxu0 %v1388
    %v1727 = vpop.f32.mrb[0].mxu0
    %v1728 = vadd.f32 %v1688, %v1727
    %v1729 = vpop.f32.mrb[0].mxu0
    %v1730 = vpop.f32.mrb[0].mxu0
    %v1731 = vpop.f32.mrb[0].mxu0
    %1732 = vdwg.mxu0
    %v1733 = vmax.f32 %v1728, 0.0
    %v1734 = vpack.c.bf16 %v1733, %v1733
    %v1735 = vld [vmem:[#allocation8] sm:$0xf]
    %v1736 = vld [vmem:[#allocation8 + $0x4] sm:$0xf]
    %v1737 = vld [vmem:[#allocation8 + $0x8] sm:$0xf]
    %v1738 = vld [vmem:[#allocation8 + $0xc] sm:$0xf]
    %v1739 = vld [vmem:[#allocation8 + $0x10] sm:$0xf]
    %v1740 = vld [vmem:[#allocation8 + $0x14] sm:$0xf]
    %v1741 = vld [vmem:[#allocation8 + $0x18] sm:$0xf]
    %v1742 = vld [vmem:[#allocation8 + $0x1c] sm:$0xf]
    %v1743 = vld [vmem:[#allocation8 + $0x20] sm:$0xf]
    %v1744 = vld [vmem:[#allocation8 + $0x24] sm:$0xf]
    %v1745 = vld [vmem:[#allocation8 + $0x28] sm:$0xf]
    %v1746 = vld [vmem:[#allocation8 + $0x2c] sm:$0xf]
    %v1747 = vld [vmem:[#allocation8 + $0x30] sm:$0xf]
    %v1748 = vld [vmem:[#allocation8 + $0x34] sm:$0xf]
    %v1749 = vld [vmem:[#allocation8 + $0x38] sm:$0xf]
    %v1750 = vld [vmem:[#allocation8 + $0x3c] sm:$0xf]
    %v1751 = vld [vmem:[%s10] sm:$0x1]
    %v1753 = vlaneseq
    %v1754 = vshrl.u32 %v1753, 7
    %v1755 = vsub.s32 0, %v1754
    %v1756 = vrot.slane %v1751, %v1755
    %v1774 = vunpack.c.l.b16 %v1735
    %v1775 = vunpack.c.l.b16 %v1736
    %v1776 = vunpack.c.l.b16 %v1737
    %v1777 = vunpack.c.l.b16 %v1738
    %v1778 = vunpack.c.l.b16 %v1739
    %v1779 = vunpack.c.l.b16 %v1740
    %v1780 = vunpack.c.l.b16 %v1741
    %v1781 = vunpack.c.l.b16 %v1742
    %v1782 = vunpack.c.l.b16 %v1743
    %v1783 = vunpack.c.l.b16 %v1744
    %v1784 = vunpack.c.l.b16 %v1745
    %v1785 = vunpack.c.l.b16 %v1746
    %v1786 = vunpack.c.l.b16 %v1747
    %v1787 = vunpack.c.l.b16 %v1748
    %v1788 = vunpack.c.l.b16 %v1749
    %v1789 = vunpack.c.l.b16 %v1750
    %v1790 = vpack.c.b16 %v1775, %v1774
    %v1791 = vpack.c.b16 %v1777, %v1776
    %v1792 = vpack.c.b16 %v1779, %v1778
    %v1793 = vpack.c.b16 %v1781, %v1780
    %v1794 = vpack.c.b16 %v1783, %v1782
    %v1795 = vpack.c.b16 %v1785, %v1784
    %v1796 = vpack.c.b16 %v1787, %v1786
    %v1797 = vpack.c.b16 %v1789, %v1788
    %1806 = vmatprep.subr.bf16.mxu0 0
    %1807 = vmatpush1.bf16.msra.mxu0 %v1790
    %1808 = vmatprep.subr.bf16.mxu0 0
    %1809 = vmatpush1.bf16.msra.mxu0 %v1791
    %1810 = vmatprep.subr.bf16.mxu0 0
    %1811 = vmatpush1.bf16.msra.mxu0 %v1792
    %1812 = vmatprep.subr.bf16.mxu0 0
    %1813 = vmatpush1.bf16.msra.mxu0 %v1793
    %1814 = vmatprep.subr.bf16.mxu0 0
    %1815 = vmatpush1.bf16.msra.mxu0 %v1794
    %1816 = vmatprep.subr.bf16.mxu0 0
    %1817 = vmatpush1.bf16.msra.mxu0 %v1795
    %1818 = vmatprep.subr.bf16.mxu0 0
    %1819 = vmatpush1.bf16.msra.mxu0 %v1796
    %1820 = vmatprep.subr.bf16.mxu0 0
    %1821 = vmatpush1.bf16.msra.mxu0 %v1797
    %1822 = vmatprep.subr.bf16.mxu0 0
    %1823 = vmatpush1.bf16.msra.mxu0 0
    %1824 = vmatprep.subr.bf16.mxu0 0
    %1825 = vmatpush1.bf16.msra.mxu0 0
    %1826 = vmatprep.subr.bf16.mxu0 0
    %1827 = vmatpush1.bf16.msra.mxu0 0
    %1828 = vmatprep.subr.bf16.mxu0 0
    %1829 = vmatpush1.bf16.msra.mxu0 0
    %1830 = vmatprep.subr.bf16.mxu0 0
    %1831 = vmatpush1.bf16.msra.mxu0 0
    %1832 = vmatprep.subr.bf16.mxu0 0
    %1833 = vmatpush1.bf16.msra.mxu0 0
    %1834 = vmatprep.subr.bf16.mxu0 0
    %1835 = vmatpush1.bf16.msra.mxu0 0
    %1836 = vmatprep.subr.bf16.mxu0 0
    %1837 = vmatpush1.bf16.msra.mxu0 0
    %1838 = vmatprep.mubr.bf16.mxu0 0
    %1839 = vmatmul.mubr.bf16.gmra.mrb[0].mxu0 %v1734
    %v1840 = vpop.f32.mrb[0].mxu0
    %v1841 = vadd.f32 %v1756, %v1840
    %v1842 = vpop.f32.mrb[0].mxu0
    %v1843 = vpop.f32.mrb[0].mxu0
    %v1844 = vpop.f32.mrb[0].mxu0
    %1845 = vdwg.mxu0
    %1846 = vst [vmem:[#allocation10] sm:$0xff] %v1841
    // Predicated region
    $region62: #{mnist_fcn_forward.1} parent=1 // pred_check
      _
    $region63: #{mnist_fcn_forward.1} parent=1 // pred_check_branch
      %1848 = sbr.rel (0) target = $region65
    $region64: #{mnist_fcn_forward.1} parent=1 // pred_region
      %s1850 = ssub.s32 128, 128
      %1851 = vsyncadd [#allocation4], %s1850
      %s1853 = sshll.u32 [#allocation10], 4
      %s1854 = int_to_ptr.vmem [resolvable:$true] %s1853
      %1856 = dma.vmem_to_hbm [thread:$0]  %s1854, 128, %s11, [#allocation4]
    $region65: #{mnist_fcn_forward.1} parent=1 // pred_fallthru
      _
    // Predicated region
    $region66: #{mnist_fcn_forward.1} parent=1 // pred_check
      _
    $region67: #{mnist_fcn_forward.1} parent=1 // pred_check_branch
      %1858 = sbr.rel (0) target = $region69
    $region68: #{mnist_fcn_forward.1} parent=1 // pred_region
      %1859 = dma.done [#allocation4], 128
    $region69: #{mnist_fcn_forward.1} parent=1 // pred_fallthru
      _
    %1860 = vsyncpa [#allocation3], 1
    %1861 = vsyncpa [#allocation6], 1
    %1862 = vsyncpa [#allocation9], 1
    %1863 = vsyncpa [#allocation4], 1

</llo_original>
